<compile_context>
chip_gen: v7x
topology: tpu7x:2x2x1
jax: 0.10.0
libtpu: 0.0.40
codegen_flags: <defaults>
</compile_context>

<pallas_src>
import numpy as np
import jax
import jax.numpy as jnp
from jax.experimental import pallas as pl
from jax.experimental.pallas import tpu as pltpu

LEAKY_SLOPE = 0.01  # nn.LeakyReLU() default negative_slope


def _round_up(x, m):
    return ((x + m - 1) // m) * m


# ---------------------------------------------------------------------------
# Pallas kernel: one grid step = (block of G objects) x (one batch tile)
# ---------------------------------------------------------------------------
def _object_mlp_kernel(x_ref, w1_ref, b1_ref, w2_ref, b2_ref, o_ref):
    # x_ref : (G, TB, d_in_pad)   object-major activation tile
    # w1_ref: (G, d_in_pad, H)    compact per-object layer-1 weights
    # b1_ref: (G, 1, H)
    # w2_ref: (G, H, d_pad)       compact per-object layer-2 weights
    # b2_ref: (G, 1, d_pad)
    # o_ref : (G, TB, d_pad)
    dn = (((2,), (1,)), ((0,), (0,)))  # contract last(x) with dim-1(w), batch over objects
    h = jax.lax.dot_general(x_ref[...], w1_ref[...], dn,
                            preferred_element_type=jnp.float32)      # (G, TB, H) f32
    h = h + b1_ref[...].astype(jnp.float32)
    h = jnp.where(h > 0, h, LEAKY_SLOPE * h)                          # LeakyReLU in f32
    y = jax.lax.dot_general(h.astype(w2_ref.dtype), w2_ref[...], dn,
                            preferred_element_type=jnp.float32)      # (G, TB, d_pad) f32
    y = y + b2_ref[...].astype(jnp.float32)
    o_ref[...] = y.astype(o_ref.dtype)


def fused_object_mlp(x_om, w1, b1, w2, b2, *, obj_block, batch_tile,
                     out_dtype=jnp.float32):
    """x_om: (n_padded, B_pad, d_in_pad) -> (n_padded, B_pad, d_pad)."""
    n_padded, B_pad, d_in_pad = x_om.shape
    H = w1.shape[-1]
    d_pad = w2.shape[-1]
    G, TB = obj_block, batch_tile
    assert n_padded % G == 0 and B_pad % TB == 0
    grid = (n_padded // G, B_pad // TB)  # batch tile innermost -> weights stay resident
    return pl.pallas_call(
        _object_mlp_kernel,
        out_shape=jax.ShapeDtypeStruct((n_padded, B_pad, d_pad), out_dtype),
        grid_spec=pl.GridSpec(
            grid=grid,
            in_specs=[
                pl.BlockSpec((G, TB, d_in_pad), lambda i, t: (i, t, 0)),
                pl.BlockSpec((G, d_in_pad, H),  lambda i, t: (i, 0, 0)),
                pl.BlockSpec((G, 1, H),         lambda i, t: (i, 0, 0)),
                pl.BlockSpec((G, H, d_pad),     lambda i, t: (i, 0, 0)),
                pl.BlockSpec((G, 1, d_pad),     lambda i, t: (i, 0, 0)),
            ],
            out_specs=pl.BlockSpec((G, TB, d_pad), lambda i, t: (i, t, 0)),
        ),
        compiler_params=pltpu.CompilerParams(
            # Both axes independent; v7x's two TensorCores split the grid.
            dimension_semantics=("parallel", "parallel"),
            # Tiles (G<=64, TB<=256, small H/d) stay far below this on every gen
            # (v5e/v6e 128 MiB physical, v7x 64 MiB physical).
            vmem_limit_bytes=32 * 1024 * 1024),
    )(x_om, w1, b1, w2, b2)


# ---------------------------------------------------------------------------
# Parameter init (per-class, MultiLinear.auto-style) + one-time compact packing
# ---------------------------------------------------------------------------
def init_multilinear_params(key, n, d_in, d_out, dtype=jnp.float32):
    kw, kb = jax.random.split(key)
    bound = 1.0 / np.sqrt(d_in)
    w = jax.random.uniform(kw, (n, d_in, d_out), dtype, -bound, bound)
    b = jax.random.uniform(kb, (n, d_out), dtype, -bound, bound)
    return w, b


def init_object_encoder_params(key, class_specs, dim_hidden, dim_out,
                               dtype=jnp.float32):
    """class_specs: dict cname -> (n_objects, [field_sizes])."""
    params = {}
    for cname, (n, field_sizes) in class_specs.items():
        d_in = int(sum(field_sizes))
        if d_in == 0:
            params[cname] = None
            continue
        key, k1, k2 = jax.random.split(key, 3)
        w1, b1 = init_multilinear_params(k1, n, d_in, dim_hidden, dtype)
        w2, b2 = init_multilinear_params(k2, n, dim_hidden, dim_out, dtype)
        params[cname] = (w1, b1, w2, b2)
    return params


def pack_object_encoder_params(params, class_specs, dim_hidden, dim_out,
                               storage_dtype=jnp.bfloat16, obj_block_target=64):
    """One-time packing of per-class per-object weights into the compact,
    object-major layout consumed by the Pallas kernel (no block-diagonal
    inflation; padding is zero so the math is exact)."""
    d_in_max = max(int(sum(fs)) for _, fs in class_specs.values())
    d_in_pad = _round_up(max(d_in_max, 1), 8)
    d_pad = _round_up(dim_out, 8)
    n_total = sum(n for n, _ in class_specs.values())

    # Objects-per-grid-step: amortize the ~0.35us step overhead, keep the
    # object grid axis non-trivial for the v7x megacore split.
    n_pad8 = _round_up(n_total, 8)
    if n_pad8 <= obj_block_target:
        obj_block, n_padded = n_pad8, n_pad8
    else:
        obj_block = obj_block_target
        n_padded = _round_up(n_pad8, obj_block)
    num_blocks = n_padded // obj_block

    w1s, b1s, w2s, b2s = [], [], [], []
    for cname, (n, field_sizes) in class_specs.items():
        d_in = int(sum(field_sizes))
        if d_in == 0 or params[cname] is None:
            # zero-field class -> zero weights/biases => exact-zero output rows
            w1s.append(jnp.zeros((n, d_in_pad, dim_hidden), jnp.float32))
            b1s.append(jnp.zeros((n, dim_hidden), jnp.float32))
            w2s.append(jnp.zeros((n, dim_hidden, d_pad), jnp.float32))
            b2s.append(jnp.zeros((n, d_pad), jnp.float32))
            continue
        w1, b1, w2, b2 = params[cname]
        w1s.append(jnp.pad(w1.astype(jnp.float32),
                           ((0, 0), (0, d_in_pad - d_in), (0, 0))))
        b1s.append(b1.astype(jnp.float32))
        w2s.append(jnp.pad(w2.astype(jnp.float32),
                           ((0, 0), (0, 0), (0, d_pad - dim_out))))
        b2s.append(jnp.pad(b2.astype(jnp.float32), ((0, 0), (0, d_pad - dim_out))))

    pad_n = n_padded - n_total
    w1 = jnp.pad(jnp.concatenate(w1s, axis=0), ((0, pad_n), (0, 0), (0, 0)))
    b1 = jnp.pad(jnp.concatenate(b1s, axis=0), ((0, pad_n), (0, 0)))
    w2 = jnp.pad(jnp.concatenate(w2s, axis=0), ((0, pad_n), (0, 0), (0, 0)))
    b2 = jnp.pad(jnp.concatenate(b2s, axis=0), ((0, pad_n), (0, 0)))

    packed = dict(
        w1=w1.astype(storage_dtype),                              # (n_padded, d_in_pad, H)
        b1=b1.reshape(n_padded, 1, dim_hidden).astype(storage_dtype),
        w2=w2.astype(storage_dtype),                              # (n_padded, H, d_pad)
        b2=b2.reshape(n_padded, 1, d_pad).astype(storage_dtype),
    )
    meta = dict(d_in_pad=d_in_pad, d_pad=d_pad, n_total=n_total, n_padded=n_padded,
                obj_block=obj_block, num_blocks=num_blocks, dim_hidden=dim_hidden,
                dim_out=dim_out, storage_dtype=storage_dtype)
    return packed, meta


# ---------------------------------------------------------------------------
# ObjectEncoder forward (thin JAX glue around the single fused Pallas call)
# ---------------------------------------------------------------------------
def object_encoder_forward(packed, meta, raw_attributes, class_specs,
                           out_dtype=jnp.float32, batch_tile_target=256):
    """raw_attributes: dict cname -> dict fieldname -> (B, n_c, size_f).
    Returns (B, sum over *present* classes of n_c, dim_out)."""
    d_in_pad, d_pad = meta["d_in_pad"], meta["d_pad"]
    n_total, n_padded = meta["n_total"], meta["n_padded"]
    D, sdtype = meta["dim_out"], meta["storage_dtype"]

    present = [c for c in class_specs if c in raw_attributes]
    assert present, "at least one class must be present"
    B = next(iter(raw_attributes[present[0]].values())).shape[0]

    # Build the object-major input slab (n_padded, B_pad, d_in_pad).
    # TODO(synk): keep activations natively in this layout to skip this chain.
    xs, offsets, off = [], {}, 0
    for cname, (n, field_sizes) in class_specs.items():
        offsets[cname] = (off, n)
        off += n
        if cname in raw_attributes and len(field_sizes) > 0:
            temp = raw_attributes[cname]
            # Field concat follows dict insertion order (== PyTorch fieldnames order).
            x_c = jnp.concatenate([temp[f] for f in temp], axis=-1)
            x_c = jnp.pad(x_c, ((0, 0), (0, 0), (0, d_in_pad - x_c.shape[-1])))
        else:
            # zero-field class (or absent class: its rows are dropped below)
            x_c = jnp.zeros((B, n, d_in_pad), jnp.float32)
        xs.append(x_c.astype(jnp.float32))
    x = jnp.concatenate(xs, axis=1)                               # (B, n_total, d_in_pad)

    # Batch tiling: weights DMA'd once per object block, resident across batch tiles.
    if B <= batch_tile_target:
        TB, B_pad = B, B
    else:
        TB = batch_tile_target
        B_pad = _round_up(B, TB)

    if n_padded > n_total:
        x = jnp.pad(x, ((0, 0), (0, n_padded - n_total), (0, 0)))
    if B_pad > B:
        x = jnp.pad(x, ((0, B_pad - B), (0, 0), (0, 0)))
    x_om = jnp.transpose(x, (1, 0, 2)).astype(sdtype)             # (n_padded, B_pad, d_in_pad)

    out = fused_object_mlp(x_om, packed["w1"], packed["b1"],
                           packed["w2"], packed["b2"],
                           obj_block=meta["obj_block"], batch_tile=TB,
                           out_dtype=out_dtype)                   # (n_padded, B_pad, d_pad)

    full = jnp.transpose(out, (1, 0, 2))[:B, :n_total]            # (B, n_total, d_pad)
    if d_pad != D:
        full = full[:, :, :D]
    if len(present) == len(class_specs):
        return full
    # Faithful to the PyTorch KeyError->continue: drop rows of absent classes.
    parts = [full[:, offsets[c][0]:offsets[c][0] + offsets[c][1], :]
             for c in class_specs if c in raw_attributes]
    return jnp.concatenate(parts, axis=1)


# ---------------------------------------------------------------------------
# Pure-JAX reference (independent per-object einsum path)
# ---------------------------------------------------------------------------
def _ref_forward(params, raw_attributes, class_specs, dim_out, dtype=jnp.float32):
    outs = []
    for cname, (n, field_sizes) in class_specs.items():
        if cname not in raw_attributes:
            continue
        temp = raw_attributes[cname]
        if len(field_sizes) > 0:
            x = jnp.concatenate([temp[f] for f in temp], axis=-1)
            w1, b1, w2, b2 = params[cname]
            h = jnp.einsum('bnd,ndh->bnh', x, w1,
                           precision=jax.lax.Precision.HIGHEST) + b1[None]
            h = jnp.where(h > 0, h, LEAKY_SLOPE * h)
            y = jnp.einsum('bnh,nho->bno', h, w2,
                           precision=jax.lax.Precision.HIGHEST) + b2[None]
            outs.append(y.astype(dtype))
        else:
            any_field = next(iter(temp.values()))
            Bq, n_c = any_field.shape[:2]
            outs.append(jnp.zeros((Bq, n_c, dim_out), dtype=dtype))
    return jnp.concatenate(outs, axis=-2)


# ---------------------------------------------------------------------------
if __name__ == "__main__":
    key = jax.random.PRNGKey(0)

    B = 2
    dim_hidden = 32
    dim_out = 16

    # Synthetic task: three object classes.
    #   "agent": 3 objects, two fields of size 2 and 4  (d_in = 6)
    #   "item" : 4 objects, one field of size 5          (d_in = 5)
    #   "wall" : 2 objects, no fields for this role -> zeros branch
    class_specs = {
        "agent": (3, [2, 4]),
        "item": (4, [5]),
        "wall": (2, []),
    }

    key, kp = jax.random.split(key)
    params = init_object_encoder_params(kp, class_specs, dim_hidden, dim_out)

    # Build raw_attributes: dict class -> dict field -> (B, n, size)
    raw_attributes = {}
    for cname, (n, field_sizes) in class_specs.items():
        fields = {}
        if field_sizes:
            for fi, fsize in enumerate(field_sizes):
                key, kf = jax.random.split(key)
                fields[f"f{fi}"] = jax.random.normal(kf, (B, n, fsize), jnp.float32)
        else:
            # The PyTorch code still peeks at a raw tensor's shape for zero-field classes.
            key, kf = jax.random.split(key)
            fields["raw_state"] = jax.random.normal(kf, (B, n, 3), jnp.float32)
        raw_attributes[cname] = fields

    ref = jax.block_until_ready(
        _ref_forward(params, raw_attributes, class_specs, dim_out))
    total_objects = sum(n for n, _ in class_specs.values())

    # Exact-parity path: f32 storage.
    packed32, meta32 = pack_object_encoder_params(
        params, class_specs, dim_hidden, dim_out, storage_dtype=jnp.float32)
    out32 = jax.block_until_ready(
        object_encoder_forward(packed32, meta32, raw_attributes, class_specs))
    assert out32.shape == (B, total_objects, dim_out), out32.shape
    np.testing.assert_allclose(np.asarray(out32), np.asarray(ref),
                               rtol=1e-5, atol=1e-5)

    # Bandwidth path: bf16 storage (half the HBM bytes; tolerance relaxed on purpose).
    packed16, meta16 = pack_object_encoder_params(
        params, class_specs, dim_hidden, dim_out, storage_dtype=jnp.bfloat16)
    out16 = jax.block_until_ready(
        object_encoder_forward(packed16, meta16, raw_attributes, class_specs))
    assert out16.shape == (B, total_objects, dim_out), out16.shape
    np.testing.assert_allclose(np.asarray(out16), np.asarray(ref),
                               rtol=5e-2, atol=5e-2)

    print("KERNEL_OK")
</pallas_src>

<mosaic_0001>
module attributes {stable_mosaic.version = 11 : i64} {
  func.func @_object_mlp_kernel(%arg0: i32, %arg1: i32, %arg2: memref<16x2x8xf32, #tpu.memory_space<vmem>>, %arg3: memref<16x8x32xf32, #tpu.memory_space<vmem>>, %arg4: memref<16x1x32xf32, #tpu.memory_space<vmem>>, %arg5: memref<16x32x16xf32, #tpu.memory_space<vmem>>, %arg6: memref<16x1x16xf32, #tpu.memory_space<vmem>>, %arg7: memref<16x2x16xf32, #tpu.memory_space<vmem>>) attributes {dimension_semantics = [#tpu.dimension_semantics<parallel>, #tpu.dimension_semantics<parallel>], iteration_bounds = array<i64: 1, 1>, scalar_prefetch = 0 : i64, scratch_operands = 0 : i64, tpu.core_type = #tpu.core_type<tc>, window_params = [{transform_indices = @transform_0, window_bounds = array<i64: 16, 2, 8>}, {transform_indices = @transform_1, window_bounds = array<i64: 16, 8, 32>}, {transform_indices = @transform_2, window_bounds = array<i64: 16, 1, 32>}, {transform_indices = @transform_3, window_bounds = array<i64: 16, 32, 16>}, {transform_indices = @transform_4, window_bounds = array<i64: 16, 1, 16>}, {transform_indices = @transform_5, window_bounds = array<i64: 16, 2, 16>}]} {
    %c0 = arith.constant 0 : index
    %c0_0 = arith.constant 0 : index
    %c0_1 = arith.constant 0 : index
    %0 = vector.load %arg2[%c0, %c0_0, %c0_1] : memref<16x2x8xf32, #tpu.memory_space<vmem>>, vector<16x2x8xf32>
    %c0_2 = arith.constant 0 : index
    %c0_3 = arith.constant 0 : index
    %c0_4 = arith.constant 0 : index
    %1 = vector.load %arg3[%c0_2, %c0_3, %c0_4] : memref<16x8x32xf32, #tpu.memory_space<vmem>>, vector<16x8x32xf32>
    %cst = arith.constant dense<0.000000e+00> : vector<16x2x32xf32>
    %2 = tpu.matmul %0, %1, %cst {dimension_numbers = #tpu.dot_dimension_numbers<[2], [1], [1], [2], [0, 0, 0, 1, 1, 2], [0], [0]>} : vector<16x2x8xf32>, vector<16x8x32xf32>, vector<16x2x32xf32> -> vector<16x2x32xf32>
    %c0_5 = arith.constant 0 : index
    %c0_6 = arith.constant 0 : index
    %c0_7 = arith.constant 0 : index
    %3 = vector.load %arg4[%c0_5, %c0_6, %c0_7] : memref<16x1x32xf32, #tpu.memory_space<vmem>>, vector<16x1x32xf32>
    %4 = vector.broadcast %3 : vector<16x1x32xf32> to vector<16x2x32xf32>
    %5 = arith.addf %2, %4 : vector<16x2x32xf32>
    %cst_8 = arith.constant 0.000000e+00 : f32
    %6 = vector.broadcast %cst_8 : f32 to vector<16x2x32xf32>
    %7 = arith.cmpf ogt, %5, %6 : vector<16x2x32xf32>
    %cst_9 = arith.constant 0.00999999977 : f32
    %8 = vector.broadcast %cst_9 : f32 to vector<16x2x32xf32>
    %9 = arith.mulf %8, %5 : vector<16x2x32xf32>
    %10 = arith.select %7, %5, %9 : vector<16x2x32xi1>, vector<16x2x32xf32>
    %c0_10 = arith.constant 0 : index
    %c0_11 = arith.constant 0 : index
    %c0_12 = arith.constant 0 : index
    %11 = vector.load %arg5[%c0_10, %c0_11, %c0_12] : memref<16x32x16xf32, #tpu.memory_space<vmem>>, vector<16x32x16xf32>
    %cst_13 = arith.constant dense<0.000000e+00> : vector<16x2x16xf32>
    %12 = tpu.matmul %10, %11, %cst_13 {dimension_numbers = #tpu.dot_dimension_numbers<[2], [1], [1], [2], [0, 0, 0, 1, 1, 2], [0], [0]>} : vector<16x2x32xf32>, vector<16x32x16xf32>, vector<16x2x16xf32> -> vector<16x2x16xf32>
    %c0_14 = arith.constant 0 : index
    %c0_15 = arith.constant 0 : index
    %c0_16 = arith.constant 0 : index
    %13 = vector.load %arg6[%c0_14, %c0_15, %c0_16] : memref<16x1x16xf32, #tpu.memory_space<vmem>>, vector<16x1x16xf32>
    %14 = vector.broadcast %13 : vector<16x1x16xf32> to vector<16x2x16xf32>
    %15 = arith.addf %12, %14 : vector<16x2x16xf32>
    %c0_17 = arith.constant 0 : index
    %c0_18 = arith.constant 0 : index
    %c0_19 = arith.constant 0 : index
    %16 = vector.load %arg7[%c0_17, %c0_18, %c0_19] : memref<16x2x16xf32, #tpu.memory_space<vmem>>, vector<16x2x16xf32>
    tpu.vector_store %arg7[%c0_17, %c0_18, %c0_19], %15 {strides = array<i32>} : memref<16x2x16xf32, #tpu.memory_space<vmem>>, vector<16x2x16xf32>,
    return
  }
  func.func @transform_0(%arg0: i32, %arg1: i32) -> (i32, i32, i32) {
    %c0_i32 = arith.constant 0 : i32
    %c0_i32_0 = arith.constant 0 : i32
    return %arg0, %arg1, %c0_i32 : i32, i32, i32
  }
  func.func @transform_1(%arg0: i32, %arg1: i32) -> (i32, i32, i32) {
    %c0_i32 = arith.constant 0 : i32
    %c0_i32_0 = arith.constant 0 : i32
    %c0_i32_1 = arith.constant 0 : i32
    return %arg0, %c0_i32, %c0_i32_0 : i32, i32, i32
  }
  func.func @transform_2(%arg0: i32, %arg1: i32) -> (i32, i32, i32) {
    %c0_i32 = arith.constant 0 : i32
    %c0_i32_0 = arith.constant 0 : i32
    %c0_i32_1 = arith.constant 0 : i32
    return %arg0, %c0_i32, %c0_i32_0 : i32, i32, i32
  }
  func.func @transform_3(%arg0: i32, %arg1: i32) -> (i32, i32, i32) {
    %c0_i32 = arith.constant 0 : i32
    %c0_i32_0 = arith.constant 0 : i32
    %c0_i32_1 = arith.constant 0 : i32
    return %arg0, %c0_i32, %c0_i32_0 : i32, i32, i32
  }
  func.func @transform_4(%arg0: i32, %arg1: i32) -> (i32, i32, i32) {
    %c0_i32 = arith.constant 0 : i32
    %c0_i32_0 = arith.constant 0 : i32
    %c0_i32_1 = arith.constant 0 : i32
    return %arg0, %c0_i32, %c0_i32_0 : i32, i32, i32
  }
  func.func @transform_5(%arg0: i32, %arg1: i32) -> (i32, i32, i32) {
    %c0_i32 = arith.constant 0 : i32
    %c0_i32_0 = arith.constant 0 : i32
    return %arg0, %arg1, %c0_i32 : i32, i32, i32
  }
}

</mosaic_0001>

<llo_original>
// kernel: tpu_custom_call.1
$region0: #{tpu_custom_call.1}
  #allocation0 [shape = 'u32[]', space=smem, size = 0x4, offset = 0x4, fixed_abs, tag = 'smem constant byte address 0x4 - core index']
  #allocation1 [shape = 'u32[144,128]{1,0:T(1,128)}', space=vmem, size = 0x12000, scoped, tag = 'internal scratch']
  %s0 = inlined_call_operand.vmem [shape: f32[16,2,8], index: 0, kind: input, shape index: {}]
  %s1 = inlined_call_operand.vmem [shape: f32[16,8,32], index: 1, kind: input, shape index: {}]
  %s2 = inlined_call_operand.vmem [shape: f32[16,1,32], index: 2, kind: input, shape index: {}]
  %s3 = inlined_call_operand.vmem [shape: f32[16,32,16], index: 3, kind: input, shape index: {}]
  %s4 = inlined_call_operand.vmem [shape: f32[16,1,16], index: 4, kind: input, shape index: {}]
  %s5 = inlined_call_operand.hbm [shape: f32[16,2,16], index: 5, kind: output, shape index: {}]
  %s6 = sld [smem:[#allocation0]]
  $region30: #{tpu_custom_call.1} parent=0
    _
  %s8 = ssub.s32 1, %s6
  %s9 = scalar_select 0, %s8, %s6
  $region1: #{tpu_custom_call.1} parent=0
    #allocation2 [shape = 'u8[16384]{0}', space=vmem, size = 0x4000, scoped, tag = 'output window, operand 0, single buffered']
    #allocation3 [shape = 's32[1]{0}', space=sflag, size = 0x4, scoped, tag = 'scoped memory for tpu_custom_call.1']
    %10 = vsyncpa [#allocation3], 0
    // Predicated region
    $region2: #{tpu_custom_call.1} parent=1 // pred_check
      _
    $region3: #{tpu_custom_call.1} parent=1 // pred_check_branch
      %12 = sbr.rel (0) target = $region5
    $region4: #{tpu_custom_call.1} parent=1 // pred_region
      _
    $region5: #{tpu_custom_call.1} parent=1 // pred_fallthru
      _
    // Predicated region
    $region6: #{tpu_custom_call.1} parent=1 // pred_check
      _
    $region7: #{tpu_custom_call.1} parent=1 // pred_check_branch
      %14 = sbr.rel (0) target = $region9
    $region8: #{tpu_custom_call.1} parent=1 // pred_region
      _
    $region9: #{tpu_custom_call.1} parent=1 // pred_fallthru
      _
    // Predicated region
    $region10: #{tpu_custom_call.1} parent=1 // pred_check
      _
    $region11: #{tpu_custom_call.1} parent=1 // pred_check_branch
      %16 = sbr.rel (0) target = $region13
    $region12: #{tpu_custom_call.1} parent=1 // pred_region
      _
    $region13: #{tpu_custom_call.1} parent=1 // pred_fallthru
      _
    // Predicated region
    $region14: #{tpu_custom_call.1} parent=1 // pred_check
      _
    $region15: #{tpu_custom_call.1} parent=1 // pred_check_branch
      %18 = sbr.rel (0) target = $region17
    $region16: #{tpu_custom_call.1} parent=1 // pred_region
      _
    $region17: #{tpu_custom_call.1} parent=1 // pred_fallthru
      _
    // Predicated region
    $region18: #{tpu_custom_call.1} parent=1 // pred_check
      _
    $region19: #{tpu_custom_call.1} parent=1 // pred_check_branch
      %20 = sbr.rel (0) target = $region21
    $region20: #{tpu_custom_call.1} parent=1 // pred_region
      _
    $region21: #{tpu_custom_call.1} parent=1 // pred_fallthru
      _
    %v21 = vld [vmem:[%s0] sm:$0x3]
    %v22 = vld [vmem:[%s0 + $0x2] sm:$0x3]
    %v23 = vld [vmem:[%s0 + $0x4] sm:$0x3]
    %v24 = vld [vmem:[%s0 + $0x6] sm:$0x3]
    %v25 = vld [vmem:[%s0 + $0x8] sm:$0x3]
    %v26 = vld [vmem:[%s0 + $0xa] sm:$0x3]
    %v27 = vld [vmem:[%s0 + $0xc] sm:$0x3]
    %v28 = vld [vmem:[%s0 + $0xe] sm:$0x3]
    %v29 = vld [vmem:[%s0 + $0x10] sm:$0x3]
    %v30 = vld [vmem:[%s0 + $0x12] sm:$0x3]
    %v31 = vld [vmem:[%s0 + $0x14] sm:$0x3]
    %v32 = vld [vmem:[%s0 + $0x16] sm:$0x3]
    %v33 = vld [vmem:[%s0 + $0x18] sm:$0x3]
    %v34 = vld [vmem:[%s0 + $0x1a] sm:$0x3]
    %v35 = vld [vmem:[%s0 + $0x1c] sm:$0x3]
    %v36 = vld [vmem:[%s0 + $0x1e] sm:$0x3]
    %v37 = vld [vmem:[%s1] sm:$0xff]
    %v38 = vld [vmem:[%s1 + $0x8] sm:$0xff]
    %v39 = vld [vmem:[%s1 + $0x10] sm:$0xff]
    %v40 = vld [vmem:[%s1 + $0x18] sm:$0xff]
    %v41 = vld [vmem:[%s1 + $0x20] sm:$0xff]
    %v42 = vld [vmem:[%s1 + $0x28] sm:$0xff]
    %v43 = vld [vmem:[%s1 + $0x30] sm:$0xff]
    %v44 = vld [vmem:[%s1 + $0x38] sm:$0xff]
    %v45 = vld [vmem:[%s1 + $0x40] sm:$0xff]
    %v46 = vld [vmem:[%s1 + $0x48] sm:$0xff]
    %v47 = vld [vmem:[%s1 + $0x50] sm:$0xff]
    %v48 = vld [vmem:[%s1 + $0x58] sm:$0xff]
    %v49 = vld [vmem:[%s1 + $0x60] sm:$0xff]
    %v50 = vld [vmem:[%s1 + $0x68] sm:$0xff]
    %v51 = vld [vmem:[%s1 + $0x70] sm:$0xff]
    %v52 = vld [vmem:[%s1 + $0x78] sm:$0xff]
    %v53 = vld [vmem:[%s2] sm:$0x1]
    %v54 = vld [vmem:[%s2 + $0x1] sm:$0x1]
    %v55 = vld [vmem:[%s2 + $0x2] sm:$0x1]
    %v56 = vld [vmem:[%s2 + $0x3] sm:$0x1]
    %v57 = vld [vmem:[%s2 + $0x4] sm:$0x1]
    %v58 = vld [vmem:[%s2 + $0x5] sm:$0x1]
    %v59 = vld [vmem:[%s2 + $0x6] sm:$0x1]
    %v60 = vld [vmem:[%s2 + $0x7] sm:$0x1]
    %v61 = vld [vmem:[%s2 + $0x8] sm:$0x1]
    %v62 = vld [vmem:[%s2 + $0x9] sm:$0x1]
    %v63 = vld [vmem:[%s2 + $0xa] sm:$0x1]
    %v64 = vld [vmem:[%s2 + $0xb] sm:$0x1]
    %v65 = vld [vmem:[%s2 + $0xc] sm:$0x1]
    %v66 = vld [vmem:[%s2 + $0xd] sm:$0x1]
    %v67 = vld [vmem:[%s2 + $0xe] sm:$0x1]
    %v68 = vld [vmem:[%s2 + $0xf] sm:$0x1]
    %v85 = vlaneseq
    %v86 = vshrl.u32 %v85, 7
    %v87 = vsub.s32 0, %v86
    %v88 = vrot.slane %v53, %v87
    %v89 = vlaneseq
    %v90 = vshrl.u32 %v89, 7
    %v91 = vsub.s32 0, %v90
    %v92 = vrot.slane %v54, %v91
    %v93 = vlaneseq
    %v94 = vshrl.u32 %v93, 7
    %v95 = vsub.s32 0, %v94
    %v96 = vrot.slane %v55, %v95
    %v97 = vlaneseq
    %v98 = vshrl.u32 %v97, 7
    %v99 = vsub.s32 0, %v98
    %v100 = vrot.slane %v56, %v99
    %v101 = vlaneseq
    %v102 = vshrl.u32 %v101, 7
    %v103 = vsub.s32 0, %v102
    %v104 = vrot.slane %v57, %v103
    %v105 = vlaneseq
    %v106 = vshrl.u32 %v105, 7
    %v107 = vsub.s32 0, %v106
    %v108 = vrot.slane %v58, %v107
    %v109 = vlaneseq
    %v110 = vshrl.u32 %v109, 7
    %v111 = vsub.s32 0, %v110
    %v112 = vrot.slane %v59, %v111
    %v113 = vlaneseq
    %v114 = vshrl.u32 %v113, 7
    %v115 = vsub.s32 0, %v114
    %v116 = vrot.slane %v60, %v115
    %v117 = vlaneseq
    %v118 = vshrl.u32 %v117, 7
    %v119 = vsub.s32 0, %v118
    %v120 = vrot.slane %v61, %v119
    %v121 = vlaneseq
    %v122 = vshrl.u32 %v121, 7
    %v123 = vsub.s32 0, %v122
    %v124 = vrot.slane %v62, %v123
    %v125 = vlaneseq
    %v126 = vshrl.u32 %v125, 7
    %v127 = vsub.s32 0, %v126
    %v128 = vrot.slane %v63, %v127
    %v129 = vlaneseq
    %v130 = vshrl.u32 %v129, 7
    %v131 = vsub.s32 0, %v130
    %v132 = vrot.slane %v64, %v131
    %v133 = vlaneseq
    %v134 = vshrl.u32 %v133, 7
    %v135 = vsub.s32 0, %v134
    %v136 = vrot.slane %v65, %v135
    %v137 = vlaneseq
    %v138 = vshrl.u32 %v137, 7
    %v139 = vsub.s32 0, %v138
    %v140 = vrot.slane %v66, %v139
    %v141 = vlaneseq
    %v142 = vshrl.u32 %v141, 7
    %v143 = vsub.s32 0, %v142
    %v144 = vrot.slane %v67, %v143
    %v145 = vlaneseq
    %v146 = vshrl.u32 %v145, 7
    %v147 = vsub.s32 0, %v146
    %v148 = vrot.slane %v68, %v147
    %vm165 = vcmask 64512
    %v167 = vsel %vm165, %v21, 0
    %169 = vmatprep.subr.mxu0 0.0
    %170 = vmatpush1.msra.mxu0 %v37
    %171 = vmatprep.subr.mxu0 0.0
    %172 = vmatpush1.msra.mxu0 0.0
    %173 = vmatprep.subr.mxu0 0.0
    %174 = vmatpush1.msra.mxu0 0.0
    %175 = vmatprep.subr.mxu0 0.0
    %176 = vmatpush1.msra.mxu0 0.0
    %177 = vmatprep.subr.mxu0 0.0
    %178 = vmatpush1.msra.mxu0 0.0
    %179 = vmatprep.subr.mxu0 0.0
    %180 = vmatpush1.msra.mxu0 0.0
    %181 = vmatprep.subr.mxu0 0.0
    %182 = vmatpush1.msra.mxu0 0.0
    %183 = vmatprep.subr.mxu0 0.0
    %184 = vmatpush1.msra.mxu0 0.0
    %185 = vmatprep.subr.mxu0 0.0
    %186 = vmatpush1.msra.mxu0 0.0
    %187 = vmatprep.subr.mxu0 0.0
    %188 = vmatpush1.msra.mxu0 0.0
    %189 = vmatprep.subr.mxu0 0.0
    %190 = vmatpush1.msra.mxu0 0.0
    %191 = vmatprep.subr.mxu0 0.0
    %192 = vmatpush1.msra.mxu0 0.0
    %193 = vmatprep.subr.mxu0 0.0
    %194 = vmatpush1.msra.mxu0 0.0
    %195 = vmatprep.subr.mxu0 0.0
    %196 = vmatpush1.msra.mxu0 0.0
    %197 = vmatprep.subr.mxu0 0.0
    %198 = vmatpush1.msra.mxu0 0.0
    %199 = vmatprep.subr.mxu0 0.0
    %200 = vmatpush1.msra.mxu0 0.0
    %201 = vmatprep.subr.mxu0 0.0
    %202 = vmatpush1.msra.mxu0 0.0
    %203 = vmatprep.subr.mxu0 0.0
    %204 = vmatpush1.msra.mxu0 0.0
    %205 = vmatprep.subr.mxu0 0.0
    %206 = vmatpush1.msra.mxu0 0.0
    %207 = vmatprep.subr.mxu0 0.0
    %208 = vmatpush1.msra.mxu0 0.0
    %209 = vmatprep.subr.mxu0 0.0
    %210 = vmatpush1.msra.mxu0 0.0
    %211 = vmatprep.subr.mxu0 0.0
    %212 = vmatpush1.msra.mxu0 0.0
    %213 = vmatprep.subr.mxu0 0.0
    %214 = vmatpush1.msra.mxu0 0.0
    %215 = vmatprep.subr.mxu0 0.0
    %216 = vmatpush1.msra.mxu0 0.0
    %217 = vmatprep.subr.mxu0 0.0
    %218 = vmatpush1.msra.mxu0 0.0
    %219 = vmatprep.subr.mxu0 0.0
    %220 = vmatpush1.msra.mxu0 0.0
    %221 = vmatprep.subr.mxu0 0.0
    %222 = vmatpush1.msra.mxu0 0.0
    %223 = vmatprep.subr.mxu0 0.0
    %224 = vmatpush1.msra.mxu0 0.0
    %225 = vmatprep.subr.mxu0 0.0
    %226 = vmatpush1.msra.mxu0 0.0
    %227 = vmatprep.subr.mxu0 0.0
    %228 = vmatpush1.msra.mxu0 0.0
    %229 = vmatprep.subr.mxu0 0.0
    %230 = vmatpush1.msra.mxu0 0.0
    %231 = vmatprep.subr.mxu0 0.0
    %232 = vmatpush1.msra.mxu0 0.0
    %233 = vmatprep.mubr.f32.mxu0 0.0
    %234 = vmatmul.mubr.f32.gmra.mrb[0].mxu0 %v167
    %v235 = vpop.f32.mrb[0].mxu0
    %v236 = vadd.f32 %v88, %v235
    %v237 = vpop.f32.mrb[0].mxu0
    %238 = vdwg.mxu0
    %v240 = vsel %vm165, %v22, 0
    %242 = vmatprep.subr.mxu0 0.0
    %243 = vmatpush1.msra.mxu0 %v38
    %244 = vmatprep.subr.mxu0 0.0
    %245 = vmatpush1.msra.mxu0 0.0
    %246 = vmatprep.subr.mxu0 0.0
    %247 = vmatpush1.msra.mxu0 0.0
    %248 = vmatprep.subr.mxu0 0.0
    %249 = vmatpush1.msra.mxu0 0.0
    %250 = vmatprep.subr.mxu0 0.0
    %251 = vmatpush1.msra.mxu0 0.0
    %252 = vmatprep.subr.mxu0 0.0
    %253 = vmatpush1.msra.mxu0 0.0
    %254 = vmatprep.subr.mxu0 0.0
    %255 = vmatpush1.msra.mxu0 0.0
    %256 = vmatprep.subr.mxu0 0.0
    %257 = vmatpush1.msra.mxu0 0.0
    %258 = vmatprep.subr.mxu0 0.0
    %259 = vmatpush1.msra.mxu0 0.0
    %260 = vmatprep.subr.mxu0 0.0
    %261 = vmatpush1.msra.mxu0 0.0
    %262 = vmatprep.subr.mxu0 0.0
    %263 = vmatpush1.msra.mxu0 0.0
    %264 = vmatprep.subr.mxu0 0.0
    %265 = vmatpush1.msra.mxu0 0.0
    %266 = vmatprep.subr.mxu0 0.0
    %267 = vmatpush1.msra.mxu0 0.0
    %268 = vmatprep.subr.mxu0 0.0
    %269 = vmatpush1.msra.mxu0 0.0
    %270 = vmatprep.subr.mxu0 0.0
    %271 = vmatpush1.msra.mxu0 0.0
    %272 = vmatprep.subr.mxu0 0.0
    %273 = vmatpush1.msra.mxu0 0.0
    %274 = vmatprep.subr.mxu0 0.0
    %275 = vmatpush1.msra.mxu0 0.0
    %276 = vmatprep.subr.mxu0 0.0
    %277 = vmatpush1.msra.mxu0 0.0
    %278 = vmatprep.subr.mxu0 0.0
    %279 = vmatpush1.msra.mxu0 0.0
    %280 = vmatprep.subr.mxu0 0.0
    %281 = vmatpush1.msra.mxu0 0.0
    %282 = vmatprep.subr.mxu0 0.0
    %283 = vmatpush1.msra.mxu0 0.0
    %284 = vmatprep.subr.mxu0 0.0
    %285 = vmatpush1.msra.mxu0 0.0
    %286 = vmatprep.subr.mxu0 0.0
    %287 = vmatpush1.msra.mxu0 0.0
    %288 = vmatprep.subr.mxu0 0.0
    %289 = vmatpush1.msra.mxu0 0.0
    %290 = vmatprep.subr.mxu0 0.0
    %291 = vmatpush1.msra.mxu0 0.0
    %292 = vmatprep.subr.mxu0 0.0
    %293 = vmatpush1.msra.mxu0 0.0
    %294 = vmatprep.subr.mxu0 0.0
    %295 = vmatpush1.msra.mxu0 0.0
    %296 = vmatprep.subr.mxu0 0.0
    %297 = vmatpush1.msra.mxu0 0.0
    %298 = vmatprep.subr.mxu0 0.0
    %299 = vmatpush1.msra.mxu0 0.0
    %300 = vmatprep.subr.mxu0 0.0
    %301 = vmatpush1.msra.mxu0 0.0
    %302 = vmatprep.subr.mxu0 0.0
    %303 = vmatpush1.msra.mxu0 0.0
    %304 = vmatprep.subr.mxu0 0.0
    %305 = vmatpush1.msra.mxu0 0.0
    %306 = vmatprep.mubr.f32.mxu0 0.0
    %307 = vmatmul.mubr.f32.gmra.mrb[0].mxu0 %v240
    %v308 = vpop.f32.mrb[0].mxu0
    %v309 = vadd.f32 %v92, %v308
    %v310 = vpop.f32.mrb[0].mxu0
    %311 = vdwg.mxu0
    %v313 = vsel %vm165, %v23, 0
    %315 = vmatprep.subr.mxu0 0.0
    %316 = vmatpush1.msra.mxu0 %v39
    %317 = vmatprep.subr.mxu0 0.0
    %318 = vmatpush1.msra.mxu0 0.0
    %319 = vmatprep.subr.mxu0 0.0
    %320 = vmatpush1.msra.mxu0 0.0
    %321 = vmatprep.subr.mxu0 0.0
    %322 = vmatpush1.msra.mxu0 0.0
    %323 = vmatprep.subr.mxu0 0.0
    %324 = vmatpush1.msra.mxu0 0.0
    %325 = vmatprep.subr.mxu0 0.0
    %326 = vmatpush1.msra.mxu0 0.0
    %327 = vmatprep.subr.mxu0 0.0
    %328 = vmatpush1.msra.mxu0 0.0
    %329 = vmatprep.subr.mxu0 0.0
    %330 = vmatpush1.msra.mxu0 0.0
    %331 = vmatprep.subr.mxu0 0.0
    %332 = vmatpush1.msra.mxu0 0.0
    %333 = vmatprep.subr.mxu0 0.0
    %334 = vmatpush1.msra.mxu0 0.0
    %335 = vmatprep.subr.mxu0 0.0
    %336 = vmatpush1.msra.mxu0 0.0
    %337 = vmatprep.subr.mxu0 0.0
    %338 = vmatpush1.msra.mxu0 0.0
    %339 = vmatprep.subr.mxu0 0.0
    %340 = vmatpush1.msra.mxu0 0.0
    %341 = vmatprep.subr.mxu0 0.0
    %342 = vmatpush1.msra.mxu0 0.0
    %343 = vmatprep.subr.mxu0 0.0
    %344 = vmatpush1.msra.mxu0 0.0
    %345 = vmatprep.subr.mxu0 0.0
    %346 = vmatpush1.msra.mxu0 0.0
    %347 = vmatprep.subr.mxu0 0.0
    %348 = vmatpush1.msra.mxu0 0.0
    %349 = vmatprep.subr.mxu0 0.0
    %350 = vmatpush1.msra.mxu0 0.0
    %351 = vmatprep.subr.mxu0 0.0
    %352 = vmatpush1.msra.mxu0 0.0
    %353 = vmatprep.subr.mxu0 0.0
    %354 = vmatpush1.msra.mxu0 0.0
    %355 = vmatprep.subr.mxu0 0.0
    %356 = vmatpush1.msra.mxu0 0.0
    %357 = vmatprep.subr.mxu0 0.0
    %358 = vmatpush1.msra.mxu0 0.0
    %359 = vmatprep.subr.mxu0 0.0
    %360 = vmatpush1.msra.mxu0 0.0
    %361 = vmatprep.subr.mxu0 0.0
    %362 = vmatpush1.msra.mxu0 0.0
    %363 = vmatprep.subr.mxu0 0.0
    %364 = vmatpush1.msra.mxu0 0.0
    %365 = vmatprep.subr.mxu0 0.0
    %366 = vmatpush1.msra.mxu0 0.0
    %367 = vmatprep.subr.mxu0 0.0
    %368 = vmatpush1.msra.mxu0 0.0
    %369 = vmatprep.subr.mxu0 0.0
    %370 = vmatpush1.msra.mxu0 0.0
    %371 = vmatprep.subr.mxu0 0.0
    %372 = vmatpush1.msra.mxu0 0.0
    %373 = vmatprep.subr.mxu0 0.0
    %374 = vmatpush1.msra.mxu0 0.0
    %375 = vmatprep.subr.mxu0 0.0
    %376 = vmatpush1.msra.mxu0 0.0
    %377 = vmatprep.subr.mxu0 0.0
    %378 = vmatpush1.msra.mxu0 0.0
    %379 = vmatprep.mubr.f32.mxu0 0.0
    %380 = vmatmul.mubr.f32.gmra.mrb[0].mxu0 %v313
    %v381 = vpop.f32.mrb[0].mxu0
    %v382 = vadd.f32 %v96, %v381
    %v383 = vpop.f32.mrb[0].mxu0
    %384 = vdwg.mxu0
    %v386 = vsel %vm165, %v24, 0
    %388 = vmatprep.subr.mxu0 0.0
    %389 = vmatpush1.msra.mxu0 %v40
    %390 = vmatprep.subr.mxu0 0.0
    %391 = vmatpush1.msra.mxu0 0.0
    %392 = vmatprep.subr.mxu0 0.0
    %393 = vmatpush1.msra.mxu0 0.0
    %394 = vmatprep.subr.mxu0 0.0
    %395 = vmatpush1.msra.mxu0 0.0
    %396 = vmatprep.subr.mxu0 0.0
    %397 = vmatpush1.msra.mxu0 0.0
    %398 = vmatprep.subr.mxu0 0.0
    %399 = vmatpush1.msra.mxu0 0.0
    %400 = vmatprep.subr.mxu0 0.0
    %401 = vmatpush1.msra.mxu0 0.0
    %402 = vmatprep.subr.mxu0 0.0
    %403 = vmatpush1.msra.mxu0 0.0
    %404 = vmatprep.subr.mxu0 0.0
    %405 = vmatpush1.msra.mxu0 0.0
    %406 = vmatprep.subr.mxu0 0.0
    %407 = vmatpush1.msra.mxu0 0.0
    %408 = vmatprep.subr.mxu0 0.0
    %409 = vmatpush1.msra.mxu0 0.0
    %410 = vmatprep.subr.mxu0 0.0
    %411 = vmatpush1.msra.mxu0 0.0
    %412 = vmatprep.subr.mxu0 0.0
    %413 = vmatpush1.msra.mxu0 0.0
    %414 = vmatprep.subr.mxu0 0.0
    %415 = vmatpush1.msra.mxu0 0.0
    %416 = vmatprep.subr.mxu0 0.0
    %417 = vmatpush1.msra.mxu0 0.0
    %418 = vmatprep.subr.mxu0 0.0
    %419 = vmatpush1.msra.mxu0 0.0
    %420 = vmatprep.subr.mxu0 0.0
    %421 = vmatpush1.msra.mxu0 0.0
    %422 = vmatprep.subr.mxu0 0.0
    %423 = vmatpush1.msra.mxu0 0.0
    %424 = vmatprep.subr.mxu0 0.0
    %425 = vmatpush1.msra.mxu0 0.0
    %426 = vmatprep.subr.mxu0 0.0
    %427 = vmatpush1.msra.mxu0 0.0
    %428 = vmatprep.subr.mxu0 0.0
    %429 = vmatpush1.msra.mxu0 0.0
    %430 = vmatprep.subr.mxu0 0.0
    %431 = vmatpush1.msra.mxu0 0.0
    %432 = vmatprep.subr.mxu0 0.0
    %433 = vmatpush1.msra.mxu0 0.0
    %434 = vmatprep.subr.mxu0 0.0
    %435 = vmatpush1.msra.mxu0 0.0
    %436 = vmatprep.subr.mxu0 0.0
    %437 = vmatpush1.msra.mxu0 0.0
    %438 = vmatprep.subr.mxu0 0.0
    %439 = vmatpush1.msra.mxu0 0.0
    %440 = vmatprep.subr.mxu0 0.0
    %441 = vmatpush1.msra.mxu0 0.0
    %442 = vmatprep.subr.mxu0 0.0
    %443 = vmatpush1.msra.mxu0 0.0
    %444 = vmatprep.subr.mxu0 0.0
    %445 = vmatpush1.msra.mxu0 0.0
    %446 = vmatprep.subr.mxu0 0.0
    %447 = vmatpush1.msra.mxu0 0.0
    %448 = vmatprep.subr.mxu0 0.0
    %449 = vmatpush1.msra.mxu0 0.0
    %450 = vmatprep.subr.mxu0 0.0
    %451 = vmatpush1.msra.mxu0 0.0
    %452 = vmatprep.mubr.f32.mxu0 0.0
    %453 = vmatmul.mubr.f32.gmra.mrb[0].mxu0 %v386
    %v454 = vpop.f32.mrb[0].mxu0
    %v455 = vadd.f32 %v100, %v454
    %v456 = vpop.f32.mrb[0].mxu0
    %457 = vdwg.mxu0
    %v459 = vsel %vm165, %v25, 0
    %461 = vmatprep.subr.mxu0 0.0
    %462 = vmatpush1.msra.mxu0 %v41
    %463 = vmatprep.subr.mxu0 0.0
    %464 = vmatpush1.msra.mxu0 0.0
    %465 = vmatprep.subr.mxu0 0.0
    %466 = vmatpush1.msra.mxu0 0.0
    %467 = vmatprep.subr.mxu0 0.0
    %468 = vmatpush1.msra.mxu0 0.0
    %469 = vmatprep.subr.mxu0 0.0
    %470 = vmatpush1.msra.mxu0 0.0
    %471 = vmatprep.subr.mxu0 0.0
    %472 = vmatpush1.msra.mxu0 0.0
    %473 = vmatprep.subr.mxu0 0.0
    %474 = vmatpush1.msra.mxu0 0.0
    %475 = vmatprep.subr.mxu0 0.0
    %476 = vmatpush1.msra.mxu0 0.0
    %477 = vmatprep.subr.mxu0 0.0
    %478 = vmatpush1.msra.mxu0 0.0
    %479 = vmatprep.subr.mxu0 0.0
    %480 = vmatpush1.msra.mxu0 0.0
    %481 = vmatprep.subr.mxu0 0.0
    %482 = vmatpush1.msra.mxu0 0.0
    %483 = vmatprep.subr.mxu0 0.0
    %484 = vmatpush1.msra.mxu0 0.0
    %485 = vmatprep.subr.mxu0 0.0
    %486 = vmatpush1.msra.mxu0 0.0
    %487 = vmatprep.subr.mxu0 0.0
    %488 = vmatpush1.msra.mxu0 0.0
    %489 = vmatprep.subr.mxu0 0.0
    %490 = vmatpush1.msra.mxu0 0.0
    %491 = vmatprep.subr.mxu0 0.0
    %492 = vmatpush1.msra.mxu0 0.0
    %493 = vmatprep.subr.mxu0 0.0
    %494 = vmatpush1.msra.mxu0 0.0
    %495 = vmatprep.subr.mxu0 0.0
    %496 = vmatpush1.msra.mxu0 0.0
    %497 = vmatprep.subr.mxu0 0.0
    %498 = vmatpush1.msra.mxu0 0.0
    %499 = vmatprep.subr.mxu0 0.0
    %500 = vmatpush1.msra.mxu0 0.0
    %501 = vmatprep.subr.mxu0 0.0
    %502 = vmatpush1.msra.mxu0 0.0
    %503 = vmatprep.subr.mxu0 0.0
    %504 = vmatpush1.msra.mxu0 0.0
    %505 = vmatprep.subr.mxu0 0.0
    %506 = vmatpush1.msra.mxu0 0.0
    %507 = vmatprep.subr.mxu0 0.0
    %508 = vmatpush1.msra.mxu0 0.0
    %509 = vmatprep.subr.mxu0 0.0
    %510 = vmatpush1.msra.mxu0 0.0
    %511 = vmatprep.subr.mxu0 0.0
    %512 = vmatpush1.msra.mxu0 0.0
    %513 = vmatprep.subr.mxu0 0.0
    %514 = vmatpush1.msra.mxu0 0.0
    %515 = vmatprep.subr.mxu0 0.0
    %516 = vmatpush1.msra.mxu0 0.0
    %517 = vmatprep.subr.mxu0 0.0
    %518 = vmatpush1.msra.mxu0 0.0
    %519 = vmatprep.subr.mxu0 0.0
    %520 = vmatpush1.msra.mxu0 0.0
    %521 = vmatprep.subr.mxu0 0.0
    %522 = vmatpush1.msra.mxu0 0.0
    %523 = vmatprep.subr.mxu0 0.0
    %524 = vmatpush1.msra.mxu0 0.0
    %525 = vmatprep.mubr.f32.mxu0 0.0
    %526 = vmatmul.mubr.f32.gmra.mrb[0].mxu0 %v459
    %v527 = vpop.f32.mrb[0].mxu0
    %v528 = vadd.f32 %v104, %v527
    %v529 = vpop.f32.mrb[0].mxu0
    %530 = vdwg.mxu0
    %v532 = vsel %vm165, %v26, 0
    %534 = vmatprep.subr.mxu0 0.0
    %535 = vmatpush1.msra.mxu0 %v42
    %536 = vmatprep.subr.mxu0 0.0
    %537 = vmatpush1.msra.mxu0 0.0
    %538 = vmatprep.subr.mxu0 0.0
    %539 = vmatpush1.msra.mxu0 0.0
    %540 = vmatprep.subr.mxu0 0.0
    %541 = vmatpush1.msra.mxu0 0.0
    %542 = vmatprep.subr.mxu0 0.0
    %543 = vmatpush1.msra.mxu0 0.0
    %544 = vmatprep.subr.mxu0 0.0
    %545 = vmatpush1.msra.mxu0 0.0
    %546 = vmatprep.subr.mxu0 0.0
    %547 = vmatpush1.msra.mxu0 0.0
    %548 = vmatprep.subr.mxu0 0.0
    %549 = vmatpush1.msra.mxu0 0.0
    %550 = vmatprep.subr.mxu0 0.0
    %551 = vmatpush1.msra.mxu0 0.0
    %552 = vmatprep.subr.mxu0 0.0
    %553 = vmatpush1.msra.mxu0 0.0
    %554 = vmatprep.subr.mxu0 0.0
    %555 = vmatpush1.msra.mxu0 0.0
    %556 = vmatprep.subr.mxu0 0.0
    %557 = vmatpush1.msra.mxu0 0.0
    %558 = vmatprep.subr.mxu0 0.0
    %559 = vmatpush1.msra.mxu0 0.0
    %560 = vmatprep.subr.mxu0 0.0
    %561 = vmatpush1.msra.mxu0 0.0
    %562 = vmatprep.subr.mxu0 0.0
    %563 = vmatpush1.msra.mxu0 0.0
    %564 = vmatprep.subr.mxu0 0.0
    %565 = vmatpush1.msra.mxu0 0.0
    %566 = vmatprep.subr.mxu0 0.0
    %567 = vmatpush1.msra.mxu0 0.0
    %568 = vmatprep.subr.mxu0 0.0
    %569 = vmatpush1.msra.mxu0 0.0
    %570 = vmatprep.subr.mxu0 0.0
    %571 = vmatpush1.msra.mxu0 0.0
    %572 = vmatprep.subr.mxu0 0.0
    %573 = vmatpush1.msra.mxu0 0.0
    %574 = vmatprep.subr.mxu0 0.0
    %575 = vmatpush1.msra.mxu0 0.0
    %576 = vmatprep.subr.mxu0 0.0
    %577 = vmatpush1.msra.mxu0 0.0
    %578 = vmatprep.subr.mxu0 0.0
    %579 = vmatpush1.msra.mxu0 0.0
    %580 = vmatprep.subr.mxu0 0.0
    %581 = vmatpush1.msra.mxu0 0.0
    %582 = vmatprep.subr.mxu0 0.0
    %583 = vmatpush1.msra.mxu0 0.0
    %584 = vmatprep.subr.mxu0 0.0
    %585 = vmatpush1.msra.mxu0 0.0
    %586 = vmatprep.subr.mxu0 0.0
    %587 = vmatpush1.msra.mxu0 0.0
    %588 = vmatprep.subr.mxu0 0.0
    %589 = vmatpush1.msra.mxu0 0.0
    %590 = vmatprep.subr.mxu0 0.0
    %591 = vmatpush1.msra.mxu0 0.0
    %592 = vmatprep.subr.mxu0 0.0
    %593 = vmatpush1.msra.mxu0 0.0
    %594 = vmatprep.subr.mxu0 0.0
    %595 = vmatpush1.msra.mxu0 0.0
    %596 = vmatprep.subr.mxu0 0.0
    %597 = vmatpush1.msra.mxu0 0.0
    %598 = vmatprep.mubr.f32.mxu0 0.0
    %599 = vmatmul.mubr.f32.gmra.mrb[0].mxu0 %v532
    %v600 = vpop.f32.mrb[0].mxu0
    %v601 = vadd.f32 %v108, %v600
    %v602 = vpop.f32.mrb[0].mxu0
    %603 = vdwg.mxu0
    %v605 = vsel %vm165, %v27, 0
    %607 = vmatprep.subr.mxu0 0.0
    %608 = vmatpush1.msra.mxu0 %v43
    %609 = vmatprep.subr.mxu0 0.0
    %610 = vmatpush1.msra.mxu0 0.0
    %611 = vmatprep.subr.mxu0 0.0
    %612 = vmatpush1.msra.mxu0 0.0
    %613 = vmatprep.subr.mxu0 0.0
    %614 = vmatpush1.msra.mxu0 0.0
    %615 = vmatprep.subr.mxu0 0.0
    %616 = vmatpush1.msra.mxu0 0.0
    %617 = vmatprep.subr.mxu0 0.0
    %618 = vmatpush1.msra.mxu0 0.0
    %619 = vmatprep.subr.mxu0 0.0
    %620 = vmatpush1.msra.mxu0 0.0
    %621 = vmatprep.subr.mxu0 0.0
    %622 = vmatpush1.msra.mxu0 0.0
    %623 = vmatprep.subr.mxu0 0.0
    %624 = vmatpush1.msra.mxu0 0.0
    %625 = vmatprep.subr.mxu0 0.0
    %626 = vmatpush1.msra.mxu0 0.0
    %627 = vmatprep.subr.mxu0 0.0
    %628 = vmatpush1.msra.mxu0 0.0
    %629 = vmatprep.subr.mxu0 0.0
    %630 = vmatpush1.msra.mxu0 0.0
    %631 = vmatprep.subr.mxu0 0.0
    %632 = vmatpush1.msra.mxu0 0.0
    %633 = vmatprep.subr.mxu0 0.0
    %634 = vmatpush1.msra.mxu0 0.0
    %635 = vmatprep.subr.mxu0 0.0
    %636 = vmatpush1.msra.mxu0 0.0
    %637 = vmatprep.subr.mxu0 0.0
    %638 = vmatpush1.msra.mxu0 0.0
    %639 = vmatprep.subr.mxu0 0.0
    %640 = vmatpush1.msra.mxu0 0.0
    %641 = vmatprep.subr.mxu0 0.0
    %642 = vmatpush1.msra.mxu0 0.0
    %643 = vmatprep.subr.mxu0 0.0
    %644 = vmatpush1.msra.mxu0 0.0
    %645 = vmatprep.subr.mxu0 0.0
    %646 = vmatpush1.msra.mxu0 0.0
    %647 = vmatprep.subr.mxu0 0.0
    %648 = vmatpush1.msra.mxu0 0.0
    %649 = vmatprep.subr.mxu0 0.0
    %650 = vmatpush1.msra.mxu0 0.0
    %651 = vmatprep.subr.mxu0 0.0
    %652 = vmatpush1.msra.mxu0 0.0
    %653 = vmatprep.subr.mxu0 0.0
    %654 = vmatpush1.msra.mxu0 0.0
    %655 = vmatprep.subr.mxu0 0.0
    %656 = vmatpush1.msra.mxu0 0.0
    %657 = vmatprep.subr.mxu0 0.0
    %658 = vmatpush1.msra.mxu0 0.0
    %659 = vmatprep.subr.mxu0 0.0
    %660 = vmatpush1.msra.mxu0 0.0
    %661 = vmatprep.subr.mxu0 0.0
    %662 = vmatpush1.msra.mxu0 0.0
    %663 = vmatprep.subr.mxu0 0.0
    %664 = vmatpush1.msra.mxu0 0.0
    %665 = vmatprep.subr.mxu0 0.0
    %666 = vmatpush1.msra.mxu0 0.0
    %667 = vmatprep.subr.mxu0 0.0
    %668 = vmatpush1.msra.mxu0 0.0
    %669 = vmatprep.subr.mxu0 0.0
    %670 = vmatpush1.msra.mxu0 0.0
    %671 = vmatprep.mubr.f32.mxu0 0.0
    %672 = vmatmul.mubr.f32.gmra.mrb[0].mxu0 %v605
    %v673 = vpop.f32.mrb[0].mxu0
    %v674 = vadd.f32 %v112, %v673
    %v675 = vpop.f32.mrb[0].mxu0
    %676 = vdwg.mxu0
    %v678 = vsel %vm165, %v28, 0
    %680 = vmatprep.subr.mxu0 0.0
    %681 = vmatpush1.msra.mxu0 %v44
    %682 = vmatprep.subr.mxu0 0.0
    %683 = vmatpush1.msra.mxu0 0.0
    %684 = vmatprep.subr.mxu0 0.0
    %685 = vmatpush1.msra.mxu0 0.0
    %686 = vmatprep.subr.mxu0 0.0
    %687 = vmatpush1.msra.mxu0 0.0
    %688 = vmatprep.subr.mxu0 0.0
    %689 = vmatpush1.msra.mxu0 0.0
    %690 = vmatprep.subr.mxu0 0.0
    %691 = vmatpush1.msra.mxu0 0.0
    %692 = vmatprep.subr.mxu0 0.0
    %693 = vmatpush1.msra.mxu0 0.0
    %694 = vmatprep.subr.mxu0 0.0
    %695 = vmatpush1.msra.mxu0 0.0
    %696 = vmatprep.subr.mxu0 0.0
    %697 = vmatpush1.msra.mxu0 0.0
    %698 = vmatprep.subr.mxu0 0.0
    %699 = vmatpush1.msra.mxu0 0.0
    %700 = vmatprep.subr.mxu0 0.0
    %701 = vmatpush1.msra.mxu0 0.0
    %702 = vmatprep.subr.mxu0 0.0
    %703 = vmatpush1.msra.mxu0 0.0
    %704 = vmatprep.subr.mxu0 0.0
    %705 = vmatpush1.msra.mxu0 0.0
    %706 = vmatprep.subr.mxu0 0.0
    %707 = vmatpush1.msra.mxu0 0.0
    %708 = vmatprep.subr.mxu0 0.0
    %709 = vmatpush1.msra.mxu0 0.0
    %710 = vmatprep.subr.mxu0 0.0
    %711 = vmatpush1.msra.mxu0 0.0
    %712 = vmatprep.subr.mxu0 0.0
    %713 = vmatpush1.msra.mxu0 0.0
    %714 = vmatprep.subr.mxu0 0.0
    %715 = vmatpush1.msra.mxu0 0.0
    %716 = vmatprep.subr.mxu0 0.0
    %717 = vmatpush1.msra.mxu0 0.0
    %718 = vmatprep.subr.mxu0 0.0
    %719 = vmatpush1.msra.mxu0 0.0
    %720 = vmatprep.subr.mxu0 0.0
    %721 = vmatpush1.msra.mxu0 0.0
    %722 = vmatprep.subr.mxu0 0.0
    %723 = vmatpush1.msra.mxu0 0.0
    %724 = vmatprep.subr.mxu0 0.0
    %725 = vmatpush1.msra.mxu0 0.0
    %726 = vmatprep.subr.mxu0 0.0
    %727 = vmatpush1.msra.mxu0 0.0
    %728 = vmatprep.subr.mxu0 0.0
    %729 = vmatpush1.msra.mxu0 0.0
    %730 = vmatprep.subr.mxu0 0.0
    %731 = vmatpush1.msra.mxu0 0.0
    %732 = vmatprep.subr.mxu0 0.0
    %733 = vmatpush1.msra.mxu0 0.0
    %734 = vmatprep.subr.mxu0 0.0
    %735 = vmatpush1.msra.mxu0 0.0
    %736 = vmatprep.subr.mxu0 0.0
    %737 = vmatpush1.msra.mxu0 0.0
    %738 = vmatprep.subr.mxu0 0.0
    %739 = vmatpush1.msra.mxu0 0.0
    %740 = vmatprep.subr.mxu0 0.0
    %741 = vmatpush1.msra.mxu0 0.0
    %742 = vmatprep.subr.mxu0 0.0
    %743 = vmatpush1.msra.mxu0 0.0
    %744 = vmatprep.mubr.f32.mxu0 0.0
    %745 = vmatmul.mubr.f32.gmra.mrb[0].mxu0 %v678
    %v746 = vpop.f32.mrb[0].mxu0
    %v747 = vadd.f32 %v116, %v746
    %v748 = vpop.f32.mrb[0].mxu0
    %749 = vdwg.mxu0
    %v751 = vsel %vm165, %v29, 0
    %753 = vmatprep.subr.mxu0 0.0
    %754 = vmatpush1.msra.mxu0 %v45
    %755 = vmatprep.subr.mxu0 0.0
    %756 = vmatpush1.msra.mxu0 0.0
    %757 = vmatprep.subr.mxu0 0.0
    %758 = vmatpush1.msra.mxu0 0.0
    %759 = vmatprep.subr.mxu0 0.0
    %760 = vmatpush1.msra.mxu0 0.0
    %761 = vmatprep.subr.mxu0 0.0
    %762 = vmatpush1.msra.mxu0 0.0
    %763 = vmatprep.subr.mxu0 0.0
    %764 = vmatpush1.msra.mxu0 0.0
    %765 = vmatprep.subr.mxu0 0.0
    %766 = vmatpush1.msra.mxu0 0.0
    %767 = vmatprep.subr.mxu0 0.0
    %768 = vmatpush1.msra.mxu0 0.0
    %769 = vmatprep.subr.mxu0 0.0
    %770 = vmatpush1.msra.mxu0 0.0
    %771 = vmatprep.subr.mxu0 0.0
    %772 = vmatpush1.msra.mxu0 0.0
    %773 = vmatprep.subr.mxu0 0.0
    %774 = vmatpush1.msra.mxu0 0.0
    %775 = vmatprep.subr.mxu0 0.0
    %776 = vmatpush1.msra.mxu0 0.0
    %777 = vmatprep.subr.mxu0 0.0
    %778 = vmatpush1.msra.mxu0 0.0
    %779 = vmatprep.subr.mxu0 0.0
    %780 = vmatpush1.msra.mxu0 0.0
    %781 = vmatprep.subr.mxu0 0.0
    %782 = vmatpush1.msra.mxu0 0.0
    %783 = vmatprep.subr.mxu0 0.0
    %784 = vmatpush1.msra.mxu0 0.0
    %785 = vmatprep.subr.mxu0 0.0
    %786 = vmatpush1.msra.mxu0 0.0
    %787 = vmatprep.subr.mxu0 0.0
    %788 = vmatpush1.msra.mxu0 0.0
    %789 = vmatprep.subr.mxu0 0.0
    %790 = vmatpush1.msra.mxu0 0.0
    %791 = vmatprep.subr.mxu0 0.0
    %792 = vmatpush1.msra.mxu0 0.0
    %793 = vmatprep.subr.mxu0 0.0
    %794 = vmatpush1.msra.mxu0 0.0
    %795 = vmatprep.subr.mxu0 0.0
    %796 = vmatpush1.msra.mxu0 0.0
    %797 = vmatprep.subr.mxu0 0.0
    %798 = vmatpush1.msra.mxu0 0.0
    %799 = vmatprep.subr.mxu0 0.0
    %800 = vmatpush1.msra.mxu0 0.0
    %801 = vmatprep.subr.mxu0 0.0
    %802 = vmatpush1.msra.mxu0 0.0
    %803 = vmatprep.subr.mxu0 0.0
    %804 = vmatpush1.msra.mxu0 0.0
    %805 = vmatprep.subr.mxu0 0.0
    %806 = vmatpush1.msra.mxu0 0.0
    %807 = vmatprep.subr.mxu0 0.0
    %808 = vmatpush1.msra.mxu0 0.0
    %809 = vmatprep.subr.mxu0 0.0
    %810 = vmatpush1.msra.mxu0 0.0
    %811 = vmatprep.subr.mxu0 0.0
    %812 = vmatpush1.msra.mxu0 0.0
    %813 = vmatprep.subr.mxu0 0.0
    %814 = vmatpush1.msra.mxu0 0.0
    %815 = vmatprep.subr.mxu0 0.0
    %816 = vmatpush1.msra.mxu0 0.0
    %817 = vmatprep.mubr.f32.mxu0 0.0
    %818 = vmatmul.mubr.f32.gmra.mrb[0].mxu0 %v751
    %v819 = vpop.f32.mrb[0].mxu0
    %v820 = vadd.f32 %v120, %v819
    %v821 = vpop.f32.mrb[0].mxu0
    %822 = vdwg.mxu0
    %v824 = vsel %vm165, %v30, 0
    %826 = vmatprep.subr.mxu0 0.0
    %827 = vmatpush1.msra.mxu0 %v46
    %828 = vmatprep.subr.mxu0 0.0
    %829 = vmatpush1.msra.mxu0 0.0
    %830 = vmatprep.subr.mxu0 0.0
    %831 = vmatpush1.msra.mxu0 0.0
    %832 = vmatprep.subr.mxu0 0.0
    %833 = vmatpush1.msra.mxu0 0.0
    %834 = vmatprep.subr.mxu0 0.0
    %835 = vmatpush1.msra.mxu0 0.0
    %836 = vmatprep.subr.mxu0 0.0
    %837 = vmatpush1.msra.mxu0 0.0
    %838 = vmatprep.subr.mxu0 0.0
    %839 = vmatpush1.msra.mxu0 0.0
    %840 = vmatprep.subr.mxu0 0.0
    %841 = vmatpush1.msra.mxu0 0.0
    %842 = vmatprep.subr.mxu0 0.0
    %843 = vmatpush1.msra.mxu0 0.0
    %844 = vmatprep.subr.mxu0 0.0
    %845 = vmatpush1.msra.mxu0 0.0
    %846 = vmatprep.subr.mxu0 0.0
    %847 = vmatpush1.msra.mxu0 0.0
    %848 = vmatprep.subr.mxu0 0.0
    %849 = vmatpush1.msra.mxu0 0.0
    %850 = vmatprep.subr.mxu0 0.0
    %851 = vmatpush1.msra.mxu0 0.0
    %852 = vmatprep.subr.mxu0 0.0
    %853 = vmatpush1.msra.mxu0 0.0
    %854 = vmatprep.subr.mxu0 0.0
    %855 = vmatpush1.msra.mxu0 0.0
    %856 = vmatprep.subr.mxu0 0.0
    %857 = vmatpush1.msra.mxu0 0.0
    %858 = vmatprep.subr.mxu0 0.0
    %859 = vmatpush1.msra.mxu0 0.0
    %860 = vmatprep.subr.mxu0 0.0
    %861 = vmatpush1.msra.mxu0 0.0
    %862 = vmatprep.subr.mxu0 0.0
    %863 = vmatpush1.msra.mxu0 0.0
    %864 = vmatprep.subr.mxu0 0.0
    %865 = vmatpush1.msra.mxu0 0.0
    %866 = vmatprep.subr.mxu0 0.0
    %867 = vmatpush1.msra.mxu0 0.0
    %868 = vmatprep.subr.mxu0 0.0
    %869 = vmatpush1.msra.mxu0 0.0
    %870 = vmatprep.subr.mxu0 0.0
    %871 = vmatpush1.msra.mxu0 0.0
    %872 = vmatprep.subr.mxu0 0.0
    %873 = vmatpush1.msra.mxu0 0.0
    %874 = vmatprep.subr.mxu0 0.0
    %875 = vmatpush1.msra.mxu0 0.0
    %876 = vmatprep.subr.mxu0 0.0
    %877 = vmatpush1.msra.mxu0 0.0
    %878 = vmatprep.subr.mxu0 0.0
    %879 = vmatpush1.msra.mxu0 0.0
    %880 = vmatprep.subr.mxu0 0.0
    %881 = vmatpush1.msra.mxu0 0.0
    %882 = vmatprep.subr.mxu0 0.0
    %883 = vmatpush1.msra.mxu0 0.0
    %884 = vmatprep.subr.mxu0 0.0
    %885 = vmatpush1.msra.mxu0 0.0
    %886 = vmatprep.subr.mxu0 0.0
    %887 = vmatpush1.msra.mxu0 0.0
    %888 = vmatprep.subr.mxu0 0.0
    %889 = vmatpush1.msra.mxu0 0.0
    %890 = vmatprep.mubr.f32.mxu0 0.0
    %891 = vmatmul.mubr.f32.gmra.mrb[0].mxu0 %v824
    %v892 = vpop.f32.mrb[0].mxu0
    %v893 = vadd.f32 %v124, %v892
    %v894 = vpop.f32.mrb[0].mxu0
    %895 = vdwg.mxu0
    %v897 = vsel %vm165, %v31, 0
    %899 = vmatprep.subr.mxu0 0.0
    %900 = vmatpush1.msra.mxu0 %v47
    %901 = vmatprep.subr.mxu0 0.0
    %902 = vmatpush1.msra.mxu0 0.0
    %903 = vmatprep.subr.mxu0 0.0
    %904 = vmatpush1.msra.mxu0 0.0
    %905 = vmatprep.subr.mxu0 0.0
    %906 = vmatpush1.msra.mxu0 0.0
    %907 = vmatprep.subr.mxu0 0.0
    %908 = vmatpush1.msra.mxu0 0.0
    %909 = vmatprep.subr.mxu0 0.0
    %910 = vmatpush1.msra.mxu0 0.0
    %911 = vmatprep.subr.mxu0 0.0
    %912 = vmatpush1.msra.mxu0 0.0
    %913 = vmatprep.subr.mxu0 0.0
    %914 = vmatpush1.msra.mxu0 0.0
    %915 = vmatprep.subr.mxu0 0.0
    %916 = vmatpush1.msra.mxu0 0.0
    %917 = vmatprep.subr.mxu0 0.0
    %918 = vmatpush1.msra.mxu0 0.0
    %919 = vmatprep.subr.mxu0 0.0
    %920 = vmatpush1.msra.mxu0 0.0
    %921 = vmatprep.subr.mxu0 0.0
    %922 = vmatpush1.msra.mxu0 0.0
    %923 = vmatprep.subr.mxu0 0.0
    %924 = vmatpush1.msra.mxu0 0.0
    %925 = vmatprep.subr.mxu0 0.0
    %926 = vmatpush1.msra.mxu0 0.0
    %927 = vmatprep.subr.mxu0 0.0
    %928 = vmatpush1.msra.mxu0 0.0
    %929 = vmatprep.subr.mxu0 0.0
    %930 = vmatpush1.msra.mxu0 0.0
    %931 = vmatprep.subr.mxu0 0.0
    %932 = vmatpush1.msra.mxu0 0.0
    %933 = vmatprep.subr.mxu0 0.0
    %934 = vmatpush1.msra.mxu0 0.0
    %935 = vmatprep.subr.mxu0 0.0
    %936 = vmatpush1.msra.mxu0 0.0
    %937 = vmatprep.subr.mxu0 0.0
    %938 = vmatpush1.msra.mxu0 0.0
    %939 = vmatprep.subr.mxu0 0.0
    %940 = vmatpush1.msra.mxu0 0.0
    %941 = vmatprep.subr.mxu0 0.0
    %942 = vmatpush1.msra.mxu0 0.0
    %943 = vmatprep.subr.mxu0 0.0
    %944 = vmatpush1.msra.mxu0 0.0
    %945 = vmatprep.subr.mxu0 0.0
    %946 = vmatpush1.msra.mxu0 0.0
    %947 = vmatprep.subr.mxu0 0.0
    %948 = vmatpush1.msra.mxu0 0.0
    %949 = vmatprep.subr.mxu0 0.0
    %950 = vmatpush1.msra.mxu0 0.0
    %951 = vmatprep.subr.mxu0 0.0
    %952 = vmatpush1.msra.mxu0 0.0
    %953 = vmatprep.subr.mxu0 0.0
    %954 = vmatpush1.msra.mxu0 0.0
    %955 = vmatprep.subr.mxu0 0.0
    %956 = vmatpush1.msra.mxu0 0.0
    %957 = vmatprep.subr.mxu0 0.0
    %958 = vmatpush1.msra.mxu0 0.0
    %959 = vmatprep.subr.mxu0 0.0
    %960 = vmatpush1.msra.mxu0 0.0
    %961 = vmatprep.subr.mxu0 0.0
    %962 = vmatpush1.msra.mxu0 0.0
    %963 = vmatprep.mubr.f32.mxu0 0.0
    %964 = vmatmul.mubr.f32.gmra.mrb[0].mxu0 %v897
    %v965 = vpop.f32.mrb[0].mxu0
    %v966 = vadd.f32 %v128, %v965
    %v967 = vpop.f32.mrb[0].mxu0
    %968 = vdwg.mxu0
    %v970 = vsel %vm165, %v32, 0
    %972 = vmatprep.subr.mxu0 0.0
    %973 = vmatpush1.msra.mxu0 %v48
    %974 = vmatprep.subr.mxu0 0.0
    %975 = vmatpush1.msra.mxu0 0.0
    %976 = vmatprep.subr.mxu0 0.0
    %977 = vmatpush1.msra.mxu0 0.0
    %978 = vmatprep.subr.mxu0 0.0
    %979 = vmatpush1.msra.mxu0 0.0
    %980 = vmatprep.subr.mxu0 0.0
    %981 = vmatpush1.msra.mxu0 0.0
    %982 = vmatprep.subr.mxu0 0.0
    %983 = vmatpush1.msra.mxu0 0.0
    %984 = vmatprep.subr.mxu0 0.0
    %985 = vmatpush1.msra.mxu0 0.0
    %986 = vmatprep.subr.mxu0 0.0
    %987 = vmatpush1.msra.mxu0 0.0
    %988 = vmatprep.subr.mxu0 0.0
    %989 = vmatpush1.msra.mxu0 0.0
    %990 = vmatprep.subr.mxu0 0.0
    %991 = vmatpush1.msra.mxu0 0.0
    %992 = vmatprep.subr.mxu0 0.0
    %993 = vmatpush1.msra.mxu0 0.0
    %994 = vmatprep.subr.mxu0 0.0
    %995 = vmatpush1.msra.mxu0 0.0
    %996 = vmatprep.subr.mxu0 0.0
    %997 = vmatpush1.msra.mxu0 0.0
    %998 = vmatprep.subr.mxu0 0.0
    %999 = vmatpush1.msra.mxu0 0.0
    %1000 = vmatprep.subr.mxu0 0.0
    %1001 = vmatpush1.msra.mxu0 0.0
    %1002 = vmatprep.subr.mxu0 0.0
    %1003 = vmatpush1.msra.mxu0 0.0
    %1004 = vmatprep.subr.mxu0 0.0
    %1005 = vmatpush1.msra.mxu0 0.0
    %1006 = vmatprep.subr.mxu0 0.0
    %1007 = vmatpush1.msra.mxu0 0.0
    %1008 = vmatprep.subr.mxu0 0.0
    %1009 = vmatpush1.msra.mxu0 0.0
    %1010 = vmatprep.subr.mxu0 0.0
    %1011 = vmatpush1.msra.mxu0 0.0
    %1012 = vmatprep.subr.mxu0 0.0
    %1013 = vmatpush1.msra.mxu0 0.0
    %1014 = vmatprep.subr.mxu0 0.0
    %1015 = vmatpush1.msra.mxu0 0.0
    %1016 = vmatprep.subr.mxu0 0.0
    %1017 = vmatpush1.msra.mxu0 0.0
    %1018 = vmatprep.subr.mxu0 0.0
    %1019 = vmatpush1.msra.mxu0 0.0
    %1020 = vmatprep.subr.mxu0 0.0
    %1021 = vmatpush1.msra.mxu0 0.0
    %1022 = vmatprep.subr.mxu0 0.0
    %1023 = vmatpush1.msra.mxu0 0.0
    %1024 = vmatprep.subr.mxu0 0.0
    %1025 = vmatpush1.msra.mxu0 0.0
    %1026 = vmatprep.subr.mxu0 0.0
    %1027 = vmatpush1.msra.mxu0 0.0
    %1028 = vmatprep.subr.mxu0 0.0
    %1029 = vmatpush1.msra.mxu0 0.0
    %1030 = vmatprep.subr.mxu0 0.0
    %1031 = vmatpush1.msra.mxu0 0.0
    %1032 = vmatprep.subr.mxu0 0.0
    %1033 = vmatpush1.msra.mxu0 0.0
    %1034 = vmatprep.subr.mxu0 0.0
    %1035 = vmatpush1.msra.mxu0 0.0
    %1036 = vmatprep.mubr.f32.mxu0 0.0
    %1037 = vmatmul.mubr.f32.gmra.mrb[0].mxu0 %v970
    %v1038 = vpop.f32.mrb[0].mxu0
    %v1039 = vadd.f32 %v132, %v1038
    %v1040 = vpop.f32.mrb[0].mxu0
    %1041 = vdwg.mxu0
    %v1043 = vsel %vm165, %v33, 0
    %1045 = vmatprep.subr.mxu0 0.0
    %1046 = vmatpush1.msra.mxu0 %v49
    %1047 = vmatprep.subr.mxu0 0.0
    %1048 = vmatpush1.msra.mxu0 0.0
    %1049 = vmatprep.subr.mxu0 0.0
    %1050 = vmatpush1.msra.mxu0 0.0
    %1051 = vmatprep.subr.mxu0 0.0
    %1052 = vmatpush1.msra.mxu0 0.0
    %1053 = vmatprep.subr.mxu0 0.0
    %1054 = vmatpush1.msra.mxu0 0.0
    %1055 = vmatprep.subr.mxu0 0.0
    %1056 = vmatpush1.msra.mxu0 0.0
    %1057 = vmatprep.subr.mxu0 0.0
    %1058 = vmatpush1.msra.mxu0 0.0
    %1059 = vmatprep.subr.mxu0 0.0
    %1060 = vmatpush1.msra.mxu0 0.0
    %1061 = vmatprep.subr.mxu0 0.0
    %1062 = vmatpush1.msra.mxu0 0.0
    %1063 = vmatprep.subr.mxu0 0.0
    %1064 = vmatpush1.msra.mxu0 0.0
    %1065 = vmatprep.subr.mxu0 0.0
    %1066 = vmatpush1.msra.mxu0 0.0
    %1067 = vmatprep.subr.mxu0 0.0
    %1068 = vmatpush1.msra.mxu0 0.0
    %1069 = vmatprep.subr.mxu0 0.0
    %1070 = vmatpush1.msra.mxu0 0.0
    %1071 = vmatprep.subr.mxu0 0.0
    %1072 = vmatpush1.msra.mxu0 0.0
    %1073 = vmatprep.subr.mxu0 0.0
    %1074 = vmatpush1.msra.mxu0 0.0
    %1075 = vmatprep.subr.mxu0 0.0
    %1076 = vmatpush1.msra.mxu0 0.0
    %1077 = vmatprep.subr.mxu0 0.0
    %1078 = vmatpush1.msra.mxu0 0.0
    %1079 = vmatprep.subr.mxu0 0.0
    %1080 = vmatpush1.msra.mxu0 0.0
    %1081 = vmatprep.subr.mxu0 0.0
    %1082 = vmatpush1.msra.mxu0 0.0
    %1083 = vmatprep.subr.mxu0 0.0
    %1084 = vmatpush1.msra.mxu0 0.0
    %1085 = vmatprep.subr.mxu0 0.0
    %1086 = vmatpush1.msra.mxu0 0.0
    %1087 = vmatprep.subr.mxu0 0.0
    %1088 = vmatpush1.msra.mxu0 0.0
    %1089 = vmatprep.subr.mxu0 0.0
    %1090 = vmatpush1.msra.mxu0 0.0
    %1091 = vmatprep.subr.mxu0 0.0
    %1092 = vmatpush1.msra.mxu0 0.0
    %1093 = vmatprep.subr.mxu0 0.0
    %1094 = vmatpush1.msra.mxu0 0.0
    %1095 = vmatprep.subr.mxu0 0.0
    %1096 = vmatpush1.msra.mxu0 0.0
    %1097 = vmatprep.subr.mxu0 0.0
    %1098 = vmatpush1.msra.mxu0 0.0
    %1099 = vmatprep.subr.mxu0 0.0
    %1100 = vmatpush1.msra.mxu0 0.0
    %1101 = vmatprep.subr.mxu0 0.0
    %1102 = vmatpush1.msra.mxu0 0.0
    %1103 = vmatprep.subr.mxu0 0.0
    %1104 = vmatpush1.msra.mxu0 0.0
    %1105 = vmatprep.subr.mxu0 0.0
    %1106 = vmatpush1.msra.mxu0 0.0
    %1107 = vmatprep.subr.mxu0 0.0
    %1108 = vmatpush1.msra.mxu0 0.0
    %1109 = vmatprep.mubr.f32.mxu0 0.0
    %1110 = vmatmul.mubr.f32.gmra.mrb[0].mxu0 %v1043
    %v1111 = vpop.f32.mrb[0].mxu0
    %v1112 = vadd.f32 %v136, %v1111
    %v1113 = vpop.f32.mrb[0].mxu0
    %1114 = vdwg.mxu0
    %v1116 = vsel %vm165, %v34, 0
    %1118 = vmatprep.subr.mxu0 0.0
    %1119 = vmatpush1.msra.mxu0 %v50
    %1120 = vmatprep.subr.mxu0 0.0
    %1121 = vmatpush1.msra.mxu0 0.0
    %1122 = vmatprep.subr.mxu0 0.0
    %1123 = vmatpush1.msra.mxu0 0.0
    %1124 = vmatprep.subr.mxu0 0.0
    %1125 = vmatpush1.msra.mxu0 0.0
    %1126 = vmatprep.subr.mxu0 0.0
    %1127 = vmatpush1.msra.mxu0 0.0
    %1128 = vmatprep.subr.mxu0 0.0
    %1129 = vmatpush1.msra.mxu0 0.0
    %1130 = vmatprep.subr.mxu0 0.0
    %1131 = vmatpush1.msra.mxu0 0.0
    %1132 = vmatprep.subr.mxu0 0.0
    %1133 = vmatpush1.msra.mxu0 0.0
    %1134 = vmatprep.subr.mxu0 0.0
    %1135 = vmatpush1.msra.mxu0 0.0
    %1136 = vmatprep.subr.mxu0 0.0
    %1137 = vmatpush1.msra.mxu0 0.0
    %1138 = vmatprep.subr.mxu0 0.0
    %1139 = vmatpush1.msra.mxu0 0.0
    %1140 = vmatprep.subr.mxu0 0.0
    %1141 = vmatpush1.msra.mxu0 0.0
    %1142 = vmatprep.subr.mxu0 0.0
    %1143 = vmatpush1.msra.mxu0 0.0
    %1144 = vmatprep.subr.mxu0 0.0
    %1145 = vmatpush1.msra.mxu0 0.0
    %1146 = vmatprep.subr.mxu0 0.0
    %1147 = vmatpush1.msra.mxu0 0.0
    %1148 = vmatprep.subr.mxu0 0.0
    %1149 = vmatpush1.msra.mxu0 0.0
    %1150 = vmatprep.subr.mxu0 0.0
    %1151 = vmatpush1.msra.mxu0 0.0
    %1152 = vmatprep.subr.mxu0 0.0
    %1153 = vmatpush1.msra.mxu0 0.0
    %1154 = vmatprep.subr.mxu0 0.0
    %1155 = vmatpush1.msra.mxu0 0.0
    %1156 = vmatprep.subr.mxu0 0.0
    %1157 = vmatpush1.msra.mxu0 0.0
    %1158 = vmatprep.subr.mxu0 0.0
    %1159 = vmatpush1.msra.mxu0 0.0
    %1160 = vmatprep.subr.mxu0 0.0
    %1161 = vmatpush1.msra.mxu0 0.0
    %1162 = vmatprep.subr.mxu0 0.0
    %1163 = vmatpush1.msra.mxu0 0.0
    %1164 = vmatprep.subr.mxu0 0.0
    %1165 = vmatpush1.msra.mxu0 0.0
    %1166 = vmatprep.subr.mxu0 0.0
    %1167 = vmatpush1.msra.mxu0 0.0
    %1168 = vmatprep.subr.mxu0 0.0
    %1169 = vmatpush1.msra.mxu0 0.0
    %1170 = vmatprep.subr.mxu0 0.0
    %1171 = vmatpush1.msra.mxu0 0.0
    %1172 = vmatprep.subr.mxu0 0.0
    %1173 = vmatpush1.msra.mxu0 0.0
    %1174 = vmatprep.subr.mxu0 0.0
    %1175 = vmatpush1.msra.mxu0 0.0
    %1176 = vmatprep.subr.mxu0 0.0
    %1177 = vmatpush1.msra.mxu0 0.0
    %1178 = vmatprep.subr.mxu0 0.0
    %1179 = vmatpush1.msra.mxu0 0.0
    %1180 = vmatprep.subr.mxu0 0.0
    %1181 = vmatpush1.msra.mxu0 0.0
    %1182 = vmatprep.mubr.f32.mxu0 0.0
    %1183 = vmatmul.mubr.f32.gmra.mrb[0].mxu0 %v1116
    %v1184 = vpop.f32.mrb[0].mxu0
    %v1185 = vadd.f32 %v140, %v1184
    %v1186 = vpop.f32.mrb[0].mxu0
    %1187 = vdwg.mxu0
    %v1189 = vsel %vm165, %v35, 0
    %1191 = vmatprep.subr.mxu0 0.0
    %1192 = vmatpush1.msra.mxu0 %v51
    %1193 = vmatprep.subr.mxu0 0.0
    %1194 = vmatpush1.msra.mxu0 0.0
    %1195 = vmatprep.subr.mxu0 0.0
    %1196 = vmatpush1.msra.mxu0 0.0
    %1197 = vmatprep.subr.mxu0 0.0
    %1198 = vmatpush1.msra.mxu0 0.0
    %1199 = vmatprep.subr.mxu0 0.0
    %1200 = vmatpush1.msra.mxu0 0.0
    %1201 = vmatprep.subr.mxu0 0.0
    %1202 = vmatpush1.msra.mxu0 0.0
    %1203 = vmatprep.subr.mxu0 0.0
    %1204 = vmatpush1.msra.mxu0 0.0
    %1205 = vmatprep.subr.mxu0 0.0
    %1206 = vmatpush1.msra.mxu0 0.0
    %1207 = vmatprep.subr.mxu0 0.0
    %1208 = vmatpush1.msra.mxu0 0.0
    %1209 = vmatprep.subr.mxu0 0.0
    %1210 = vmatpush1.msra.mxu0 0.0
    %1211 = vmatprep.subr.mxu0 0.0
    %1212 = vmatpush1.msra.mxu0 0.0
    %1213 = vmatprep.subr.mxu0 0.0
    %1214 = vmatpush1.msra.mxu0 0.0
    %1215 = vmatprep.subr.mxu0 0.0
    %1216 = vmatpush1.msra.mxu0 0.0
    %1217 = vmatprep.subr.mxu0 0.0
    %1218 = vmatpush1.msra.mxu0 0.0
    %1219 = vmatprep.subr.mxu0 0.0
    %1220 = vmatpush1.msra.mxu0 0.0
    %1221 = vmatprep.subr.mxu0 0.0
    %1222 = vmatpush1.msra.mxu0 0.0
    %1223 = vmatprep.subr.mxu0 0.0
    %1224 = vmatpush1.msra.mxu0 0.0
    %1225 = vmatprep.subr.mxu0 0.0
    %1226 = vmatpush1.msra.mxu0 0.0
    %1227 = vmatprep.subr.mxu0 0.0
    %1228 = vmatpush1.msra.mxu0 0.0
    %1229 = vmatprep.subr.mxu0 0.0
    %1230 = vmatpush1.msra.mxu0 0.0
    %1231 = vmatprep.subr.mxu0 0.0
    %1232 = vmatpush1.msra.mxu0 0.0
    %1233 = vmatprep.subr.mxu0 0.0
    %1234 = vmatpush1.msra.mxu0 0.0
    %1235 = vmatprep.subr.mxu0 0.0
    %1236 = vmatpush1.msra.mxu0 0.0
    %1237 = vmatprep.subr.mxu0 0.0
    %1238 = vmatpush1.msra.mxu0 0.0
    %1239 = vmatprep.subr.mxu0 0.0
    %1240 = vmatpush1.msra.mxu0 0.0
    %1241 = vmatprep.subr.mxu0 0.0
    %1242 = vmatpush1.msra.mxu0 0.0
    %1243 = vmatprep.subr.mxu0 0.0
    %1244 = vmatpush1.msra.mxu0 0.0
    %1245 = vmatprep.subr.mxu0 0.0
    %1246 = vmatpush1.msra.mxu0 0.0
    %1247 = vmatprep.subr.mxu0 0.0
    %1248 = vmatpush1.msra.mxu0 0.0
    %1249 = vmatprep.subr.mxu0 0.0
    %1250 = vmatpush1.msra.mxu0 0.0
    %1251 = vmatprep.subr.mxu0 0.0
    %1252 = vmatpush1.msra.mxu0 0.0
    %1253 = vmatprep.subr.mxu0 0.0
    %1254 = vmatpush1.msra.mxu0 0.0
    %1255 = vmatprep.mubr.f32.mxu0 0.0
    %1256 = vmatmul.mubr.f32.gmra.mrb[0].mxu0 %v1189
    %v1257 = vpop.f32.mrb[0].mxu0
    %v1258 = vadd.f32 %v144, %v1257
    %v1259 = vpop.f32.mrb[0].mxu0
    %1260 = vdwg.mxu0
    %v1262 = vsel %vm165, %v36, 0
    %1264 = vmatprep.subr.mxu0 0.0
    %1265 = vmatpush1.msra.mxu0 %v52
    %1266 = vmatprep.subr.mxu0 0.0
    %1267 = vmatpush1.msra.mxu0 0.0
    %1268 = vmatprep.subr.mxu0 0.0
    %1269 = vmatpush1.msra.mxu0 0.0
    %1270 = vmatprep.subr.mxu0 0.0
    %1271 = vmatpush1.msra.mxu0 0.0
    %1272 = vmatprep.subr.mxu0 0.0
    %1273 = vmatpush1.msra.mxu0 0.0
    %1274 = vmatprep.subr.mxu0 0.0
    %1275 = vmatpush1.msra.mxu0 0.0
    %1276 = vmatprep.subr.mxu0 0.0
    %1277 = vmatpush1.msra.mxu0 0.0
    %1278 = vmatprep.subr.mxu0 0.0
    %1279 = vmatpush1.msra.mxu0 0.0
    %1280 = vmatprep.subr.mxu0 0.0
    %1281 = vmatpush1.msra.mxu0 0.0
    %1282 = vmatprep.subr.mxu0 0.0
    %1283 = vmatpush1.msra.mxu0 0.0
    %1284 = vmatprep.subr.mxu0 0.0
    %1285 = vmatpush1.msra.mxu0 0.0
    %1286 = vmatprep.subr.mxu0 0.0
    %1287 = vmatpush1.msra.mxu0 0.0
    %1288 = vmatprep.subr.mxu0 0.0
    %1289 = vmatpush1.msra.mxu0 0.0
    %1290 = vmatprep.subr.mxu0 0.0
    %1291 = vmatpush1.msra.mxu0 0.0
    %1292 = vmatprep.subr.mxu0 0.0
    %1293 = vmatpush1.msra.mxu0 0.0
    %1294 = vmatprep.subr.mxu0 0.0
    %1295 = vmatpush1.msra.mxu0 0.0
    %1296 = vmatprep.subr.mxu0 0.0
    %1297 = vmatpush1.msra.mxu0 0.0
    %1298 = vmatprep.subr.mxu0 0.0
    %1299 = vmatpush1.msra.mxu0 0.0
    %1300 = vmatprep.subr.mxu0 0.0
    %1301 = vmatpush1.msra.mxu0 0.0
    %1302 = vmatprep.subr.mxu0 0.0
    %1303 = vmatpush1.msra.mxu0 0.0
    %1304 = vmatprep.subr.mxu0 0.0
    %1305 = vmatpush1.msra.mxu0 0.0
    %1306 = vmatprep.subr.mxu0 0.0
    %1307 = vmatpush1.msra.mxu0 0.0
    %1308 = vmatprep.subr.mxu0 0.0
    %1309 = vmatpush1.msra.mxu0 0.0
    %1310 = vmatprep.subr.mxu0 0.0
    %1311 = vmatpush1.msra.mxu0 0.0
    %1312 = vmatprep.subr.mxu0 0.0
    %1313 = vmatpush1.msra.mxu0 0.0
    %1314 = vmatprep.subr.mxu0 0.0
    %1315 = vmatpush1.msra.mxu0 0.0
    %1316 = vmatprep.subr.mxu0 0.0
    %1317 = vmatpush1.msra.mxu0 0.0
    %1318 = vmatprep.subr.mxu0 0.0
    %1319 = vmatpush1.msra.mxu0 0.0
    %1320 = vmatprep.subr.mxu0 0.0
    %1321 = vmatpush1.msra.mxu0 0.0
    %1322 = vmatprep.subr.mxu0 0.0
    %1323 = vmatpush1.msra.mxu0 0.0
    %1324 = vmatprep.subr.mxu0 0.0
    %1325 = vmatpush1.msra.mxu0 0.0
    %1326 = vmatprep.subr.mxu0 0.0
    %1327 = vmatpush1.msra.mxu0 0.0
    %1328 = vmatprep.mubr.f32.mxu0 0.0
    %1329 = vmatmul.mubr.f32.gmra.mrb[0].mxu0 %v1262
    %v1330 = vpop.f32.mrb[0].mxu0
    %v1331 = vadd.f32 %v148, %v1330
    %v1332 = vpop.f32.mrb[0].mxu0
    %1333 = vdwg.mxu0
    %vm1334 = vcmp.gt.f32.partialorder %v236, 0.0
    %vm1335 = vcmp.gt.f32.partialorder %v309, 0.0
    %vm1336 = vcmp.gt.f32.partialorder %v382, 0.0
    %vm1337 = vcmp.gt.f32.partialorder %v455, 0.0
    %vm1338 = vcmp.gt.f32.partialorder %v528, 0.0
    %vm1339 = vcmp.gt.f32.partialorder %v601, 0.0
    %vm1340 = vcmp.gt.f32.partialorder %v674, 0.0
    %vm1341 = vcmp.gt.f32.partialorder %v747, 0.0
    %vm1342 = vcmp.gt.f32.partialorder %v820, 0.0
    %vm1343 = vcmp.gt.f32.partialorder %v893, 0.0
    %vm1344 = vcmp.gt.f32.partialorder %v966, 0.0
    %vm1345 = vcmp.gt.f32.partialorder %v1039, 0.0
    %vm1346 = vcmp.gt.f32.partialorder %v1112, 0.0
    %vm1347 = vcmp.gt.f32.partialorder %v1185, 0.0
    %vm1348 = vcmp.gt.f32.partialorder %v1258, 0.0
    %vm1349 = vcmp.gt.f32.partialorder %v1331, 0.0
    %v1350 = vmul.f32 %v236, 0.01
    %v1351 = vmul.f32 %v309, 0.01
    %v1352 = vmul.f32 %v382, 0.01
    %v1353 = vmul.f32 %v455, 0.01
    %v1354 = vmul.f32 %v528, 0.01
    %v1355 = vmul.f32 %v601, 0.01
    %v1356 = vmul.f32 %v674, 0.01
    %v1357 = vmul.f32 %v747, 0.01
    %v1358 = vmul.f32 %v820, 0.01
    %v1359 = vmul.f32 %v893, 0.01
    %v1360 = vmul.f32 %v966, 0.01
    %v1361 = vmul.f32 %v1039, 0.01
    %v1362 = vmul.f32 %v1112, 0.01
    %v1363 = vmul.f32 %v1185, 0.01
    %v1364 = vmul.f32 %v1258, 0.01
    %v1365 = vmul.f32 %v1331, 0.01
    %v1366 = vsel %vm1334, %v236, %v1350
    %v1367 = vsel %vm1335, %v309, %v1351
    %v1368 = vsel %vm1336, %v382, %v1352
    %v1369 = vsel %vm1337, %v455, %v1353
    %v1370 = vsel %vm1338, %v528, %v1354
    %v1371 = vsel %vm1339, %v601, %v1355
    %v1372 = vsel %vm1340, %v674, %v1356
    %v1373 = vsel %vm1341, %v747, %v1357
    %v1374 = vsel %vm1342, %v820, %v1358
    %v1375 = vsel %vm1343, %v893, %v1359
    %v1376 = vsel %vm1344, %v966, %v1360
    %v1377 = vsel %vm1345, %v1039, %v1361
    %v1378 = vsel %vm1346, %v1112, %v1362
    %v1379 = vsel %vm1347, %v1185, %v1363
    %v1380 = vsel %vm1348, %v1258, %v1364
    %v1381 = vsel %vm1349, %v1331, %v1365
    %v1382 = vld [vmem:[%s3] sm:$0xff]
    %v1383 = vld [vmem:[%s3 + $0x8] sm:$0xff]
    %v1384 = vld [vmem:[%s3 + $0x10] sm:$0xff]
    %v1385 = vld [vmem:[%s3 + $0x18] sm:$0xff]
    %v1386 = vld [vmem:[%s3 + $0x20] sm:$0xff]
    %v1387 = vld [vmem:[%s3 + $0x28] sm:$0xff]
    %v1388 = vld [vmem:[%s3 + $0x30] sm:$0xff]
    %v1389 = vld [vmem:[%s3 + $0x38] sm:$0xff]
    %v1390 = vld [vmem:[%s3 + $0x40] sm:$0xff]
    %v1391 = vld [vmem:[%s3 + $0x48] sm:$0xff]
    %v1392 = vld [vmem:[%s3 + $0x50] sm:$0xff]
    %v1393 = vld [vmem:[%s3 + $0x58] sm:$0xff]
    %v1394 = vld [vmem:[%s3 + $0x60] sm:$0xff]
    %v1395 = vld [vmem:[%s3 + $0x68] sm:$0xff]
    %v1396 = vld [vmem:[%s3 + $0x70] sm:$0xff]
    %v1397 = vld [vmem:[%s3 + $0x78] sm:$0xff]
    %v1398 = vld [vmem:[%s3 + $0x80] sm:$0xff]
    %v1399 = vld [vmem:[%s3 + $0x88] sm:$0xff]
    %v1400 = vld [vmem:[%s3 + $0x90] sm:$0xff]
    %v1401 = vld [vmem:[%s3 + $0x98] sm:$0xff]
    %v1402 = vld [vmem:[%s3 + $0xa0] sm:$0xff]
    %v1403 = vld [vmem:[%s3 + $0xa8] sm:$0xff]
    %v1404 = vld [vmem:[%s3 + $0xb0] sm:$0xff]
    %v1405 = vld [vmem:[%s3 + $0xb8] sm:$0xff]
    %v1406 = vld [vmem:[%s3 + $0xc0] sm:$0xff]
    %v1407 = vld [vmem:[%s3 + $0xc8] sm:$0xff]
    %v1408 = vld [vmem:[%s3 + $0xd0] sm:$0xff]
    %v1409 = vld [vmem:[%s3 + $0xd8] sm:$0xff]
    %v1410 = vld [vmem:[%s3 + $0xe0] sm:$0xff]
    %v1411 = vld [vmem:[%s3 + $0xe8] sm:$0xff]
    %v1412 = vld [vmem:[%s3 + $0xf0] sm:$0xff]
    %v1413 = vld [vmem:[%s3 + $0xf8] sm:$0xff]
    %v1414 = vld [vmem:[%s3 + $0x100] sm:$0xff]
    %v1415 = vld [vmem:[%s3 + $0x108] sm:$0xff]
    %v1416 = vld [vmem:[%s3 + $0x110] sm:$0xff]
    %v1417 = vld [vmem:[%s3 + $0x118] sm:$0xff]
    %v1418 = vld [vmem:[%s3 + $0x120] sm:$0xff]
    %v1419 = vld [vmem:[%s3 + $0x128] sm:$0xff]
    %v1420 = vld [vmem:[%s3 + $0x130] sm:$0xff]
    %v1421 = vld [vmem:[%s3 + $0x138] sm:$0xff]
    %v1422 = vld [vmem:[%s3 + $0x140] sm:$0xff]
    %v1423 = vld [vmem:[%s3 + $0x148] sm:$0xff]
    %v1424 = vld [vmem:[%s3 + $0x150] sm:$0xff]
    %v1425 = vld [vmem:[%s3 + $0x158] sm:$0xff]
    %v1426 = vld [vmem:[%s3 + $0x160] sm:$0xff]
    %v1427 = vld [vmem:[%s3 + $0x168] sm:$0xff]
    %v1428 = vld [vmem:[%s3 + $0x170] sm:$0xff]
    %v1429 = vld [vmem:[%s3 + $0x178] sm:$0xff]
    %v1430 = vld [vmem:[%s3 + $0x180] sm:$0xff]
    %v1431 = vld [vmem:[%s3 + $0x188] sm:$0xff]
    %v1432 = vld [vmem:[%s3 + $0x190] sm:$0xff]
    %v1433 = vld [vmem:[%s3 + $0x198] sm:$0xff]
    %v1434 = vld [vmem:[%s3 + $0x1a0] sm:$0xff]
    %v1435 = vld [vmem:[%s3 + $0x1a8] sm:$0xff]
    %v1436 = vld [vmem:[%s3 + $0x1b0] sm:$0xff]
    %v1437 = vld [vmem:[%s3 + $0x1b8] sm:$0xff]
    %v1438 = vld [vmem:[%s3 + $0x1c0] sm:$0xff]
    %v1439 = vld [vmem:[%s3 + $0x1c8] sm:$0xff]
    %v1440 = vld [vmem:[%s3 + $0x1d0] sm:$0xff]
    %v1441 = vld [vmem:[%s3 + $0x1d8] sm:$0xff]
    %v1442 = vld [vmem:[%s3 + $0x1e0] sm:$0xff]
    %v1443 = vld [vmem:[%s3 + $0x1e8] sm:$0xff]
    %v1444 = vld [vmem:[%s3 + $0x1f0] sm:$0xff]
    %v1445 = vld [vmem:[%s3 + $0x1f8] sm:$0xff]
    %v1446 = vld [vmem:[%s4] sm:$0x1]
    %v1447 = vld [vmem:[%s4 + $0x1] sm:$0x1]
    %v1448 = vld [vmem:[%s4 + $0x2] sm:$0x1]
    %v1449 = vld [vmem:[%s4 + $0x3] sm:$0x1]
    %v1450 = vld [vmem:[%s4 + $0x4] sm:$0x1]
    %v1451 = vld [vmem:[%s4 + $0x5] sm:$0x1]
    %v1452 = vld [vmem:[%s4 + $0x6] sm:$0x1]
    %v1453 = vld [vmem:[%s4 + $0x7] sm:$0x1]
    %v1454 = vld [vmem:[%s4 + $0x8] sm:$0x1]
    %v1455 = vld [vmem:[%s4 + $0x9] sm:$0x1]
    %v1456 = vld [vmem:[%s4 + $0xa] sm:$0x1]
    %v1457 = vld [vmem:[%s4 + $0xb] sm:$0x1]
    %v1458 = vld [vmem:[%s4 + $0xc] sm:$0x1]
    %v1459 = vld [vmem:[%s4 + $0xd] sm:$0x1]
    %v1460 = vld [vmem:[%s4 + $0xe] sm:$0x1]
    %v1461 = vld [vmem:[%s4 + $0xf] sm:$0x1]
    %v1478 = vlaneseq
    %v1479 = vshrl.u32 %v1478, 7
    %v1480 = vsub.s32 0, %v1479
    %v1481 = vrot.slane %v1446, %v1480
    %v1482 = vlaneseq
    %v1483 = vshrl.u32 %v1482, 7
    %v1484 = vsub.s32 0, %v1483
    %v1485 = vrot.slane %v1447, %v1484
    %v1486 = vlaneseq
    %v1487 = vshrl.u32 %v1486, 7
    %v1488 = vsub.s32 0, %v1487
    %v1489 = vrot.slane %v1448, %v1488
    %v1490 = vlaneseq
    %v1491 = vshrl.u32 %v1490, 7
    %v1492 = vsub.s32 0, %v1491
    %v1493 = vrot.slane %v1449, %v1492
    %v1494 = vlaneseq
    %v1495 = vshrl.u32 %v1494, 7
    %v1496 = vsub.s32 0, %v1495
    %v1497 = vrot.slane %v1450, %v1496
    %v1498 = vlaneseq
    %v1499 = vshrl.u32 %v1498, 7
    %v1500 = vsub.s32 0, %v1499
    %v1501 = vrot.slane %v1451, %v1500
    %v1502 = vlaneseq
    %v1503 = vshrl.u32 %v1502, 7
    %v1504 = vsub.s32 0, %v1503
    %v1505 = vrot.slane %v1452, %v1504
    %v1506 = vlaneseq
    %v1507 = vshrl.u32 %v1506, 7
    %v1508 = vsub.s32 0, %v1507
    %v1509 = vrot.slane %v1453, %v1508
    %v1510 = vlaneseq
    %v1511 = vshrl.u32 %v1510, 7
    %v1512 = vsub.s32 0, %v1511
    %v1513 = vrot.slane %v1454, %v1512
    %v1514 = vlaneseq
    %v1515 = vshrl.u32 %v1514, 7
    %v1516 = vsub.s32 0, %v1515
    %v1517 = vrot.slane %v1455, %v1516
    %v1518 = vlaneseq
    %v1519 = vshrl.u32 %v1518, 7
    %v1520 = vsub.s32 0, %v1519
    %v1521 = vrot.slane %v1456, %v1520
    %v1522 = vlaneseq
    %v1523 = vshrl.u32 %v1522, 7
    %v1524 = vsub.s32 0, %v1523
    %v1525 = vrot.slane %v1457, %v1524
    %v1526 = vlaneseq
    %v1527 = vshrl.u32 %v1526, 7
    %v1528 = vsub.s32 0, %v1527
    %v1529 = vrot.slane %v1458, %v1528
    %v1530 = vlaneseq
    %v1531 = vshrl.u32 %v1530, 7
    %v1532 = vsub.s32 0, %v1531
    %v1533 = vrot.slane %v1459, %v1532
    %v1534 = vlaneseq
    %v1535 = vshrl.u32 %v1534, 7
    %v1536 = vsub.s32 0, %v1535
    %v1537 = vrot.slane %v1460, %v1536
    %v1538 = vlaneseq
    %v1539 = vshrl.u32 %v1538, 7
    %v1540 = vsub.s32 0, %v1539
    %v1541 = vrot.slane %v1461, %v1540
    %vm1558 = vcmask 261120
    %v1560 = vsel %vm1558, %v1366, 0
    %1562 = vmatprep.subr.mxu0 0.0
    %1563 = vmatpush1.msra.mxu0 %v1382
    %1564 = vmatprep.subr.mxu0 0.0
    %1565 = vmatpush1.msra.mxu0 %v1383
    %1566 = vmatprep.subr.mxu0 0.0
    %1567 = vmatpush1.msra.mxu0 %v1384
    %1568 = vmatprep.subr.mxu0 0.0
    %1569 = vmatpush1.msra.mxu0 %v1385
    %1570 = vmatprep.subr.mxu0 0.0
    %1571 = vmatpush1.msra.mxu0 0.0
    %1572 = vmatprep.subr.mxu0 0.0
    %1573 = vmatpush1.msra.mxu0 0.0
    %1574 = vmatprep.subr.mxu0 0.0
    %1575 = vmatpush1.msra.mxu0 0.0
    %1576 = vmatprep.subr.mxu0 0.0
    %1577 = vmatpush1.msra.mxu0 0.0
    %1578 = vmatprep.subr.mxu0 0.0
    %1579 = vmatpush1.msra.mxu0 0.0
    %1580 = vmatprep.subr.mxu0 0.0
    %1581 = vmatpush1.msra.mxu0 0.0
    %1582 = vmatprep.subr.mxu0 0.0
    %1583 = vmatpush1.msra.mxu0 0.0
    %1584 = vmatprep.subr.mxu0 0.0
    %1585 = vmatpush1.msra.mxu0 0.0
    %1586 = vmatprep.subr.mxu0 0.0
    %1587 = vmatpush1.msra.mxu0 0.0
    %1588 = vmatprep.subr.mxu0 0.0
    %1589 = vmatpush1.msra.mxu0 0.0
    %1590 = vmatprep.subr.mxu0 0.0
    %1591 = vmatpush1.msra.mxu0 0.0
    %1592 = vmatprep.subr.mxu0 0.0
    %1593 = vmatpush1.msra.mxu0 0.0
    %1594 = vmatprep.subr.mxu0 0.0
    %1595 = vmatpush1.msra.mxu0 0.0
    %1596 = vmatprep.subr.mxu0 0.0
    %1597 = vmatpush1.msra.mxu0 0.0
    %1598 = vmatprep.subr.mxu0 0.0
    %1599 = vmatpush1.msra.mxu0 0.0
    %1600 = vmatprep.subr.mxu0 0.0
    %1601 = vmatpush1.msra.mxu0 0.0
    %1602 = vmatprep.subr.mxu0 0.0
    %1603 = vmatpush1.msra.mxu0 0.0
    %1604 = vmatprep.subr.mxu0 0.0
    %1605 = vmatpush1.msra.mxu0 0.0
    %1606 = vmatprep.subr.mxu0 0.0
    %1607 = vmatpush1.msra.mxu0 0.0
    %1608 = vmatprep.subr.mxu0 0.0
    %1609 = vmatpush1.msra.mxu0 0.0
    %1610 = vmatprep.subr.mxu0 0.0
    %1611 = vmatpush1.msra.mxu0 0.0
    %1612 = vmatprep.subr.mxu0 0.0
    %1613 = vmatpush1.msra.mxu0 0.0
    %1614 = vmatprep.subr.mxu0 0.0
    %1615 = vmatpush1.msra.mxu0 0.0
    %1616 = vmatprep.subr.mxu0 0.0
    %1617 = vmatpush1.msra.mxu0 0.0
    %1618 = vmatprep.subr.mxu0 0.0
    %1619 = vmatpush1.msra.mxu0 0.0
    %1620 = vmatprep.subr.mxu0 0.0
    %1621 = vmatpush1.msra.mxu0 0.0
    %1622 = vmatprep.subr.mxu0 0.0
    %1623 = vmatpush1.msra.mxu0 0.0
    %1624 = vmatprep.subr.mxu0 0.0
    %1625 = vmatpush1.msra.mxu0 0.0
    %1626 = vmatprep.mubr.f32.mxu0 0.0
    %1627 = vmatmul.mubr.f32.gmra.mrb[0].mxu0 %v1560
    %v1628 = vpop.f32.mrb[0].mxu0
    %v1629 = vadd.f32 %v1481, %v1628
    %v1630 = vpop.f32.mrb[0].mxu0
    %1631 = vdwg.mxu0
    %v1633 = vsel %vm1558, %v1367, 0
    %1635 = vmatprep.subr.mxu0 0.0
    %1636 = vmatpush1.msra.mxu0 %v1386
    %1637 = vmatprep.subr.mxu0 0.0
    %1638 = vmatpush1.msra.mxu0 %v1387
    %1639 = vmatprep.subr.mxu0 0.0
    %1640 = vmatpush1.msra.mxu0 %v1388
    %1641 = vmatprep.subr.mxu0 0.0
    %1642 = vmatpush1.msra.mxu0 %v1389
    %1643 = vmatprep.subr.mxu0 0.0
    %1644 = vmatpush1.msra.mxu0 0.0
    %1645 = vmatprep.subr.mxu0 0.0
    %1646 = vmatpush1.msra.mxu0 0.0
    %1647 = vmatprep.subr.mxu0 0.0
    %1648 = vmatpush1.msra.mxu0 0.0
    %1649 = vmatprep.subr.mxu0 0.0
    %1650 = vmatpush1.msra.mxu0 0.0
    %1651 = vmatprep.subr.mxu0 0.0
    %1652 = vmatpush1.msra.mxu0 0.0
    %1653 = vmatprep.subr.mxu0 0.0
    %1654 = vmatpush1.msra.mxu0 0.0
    %1655 = vmatprep.subr.mxu0 0.0
    %1656 = vmatpush1.msra.mxu0 0.0
    %1657 = vmatprep.subr.mxu0 0.0
    %1658 = vmatpush1.msra.mxu0 0.0
    %1659 = vmatprep.subr.mxu0 0.0
    %1660 = vmatpush1.msra.mxu0 0.0
    %1661 = vmatprep.subr.mxu0 0.0
    %1662 = vmatpush1.msra.mxu0 0.0
    %1663 = vmatprep.subr.mxu0 0.0
    %1664 = vmatpush1.msra.mxu0 0.0
    %1665 = vmatprep.subr.mxu0 0.0
    %1666 = vmatpush1.msra.mxu0 0.0
    %1667 = vmatprep.subr.mxu0 0.0
    %1668 = vmatpush1.msra.mxu0 0.0
    %1669 = vmatprep.subr.mxu0 0.0
    %1670 = vmatpush1.msra.mxu0 0.0
    %1671 = vmatprep.subr.mxu0 0.0
    %1672 = vmatpush1.msra.mxu0 0.0
    %1673 = vmatprep.subr.mxu0 0.0
    %1674 = vmatpush1.msra.mxu0 0.0
    %1675 = vmatprep.subr.mxu0 0.0
    %1676 = vmatpush1.msra.mxu0 0.0
    %1677 = vmatprep.subr.mxu0 0.0
    %1678 = vmatpush1.msra.mxu0 0.0
    %1679 = vmatprep.subr.mxu0 0.0
    %1680 = vmatpush1.msra.mxu0 0.0
    %1681 = vmatprep.subr.mxu0 0.0
    %1682 = vmatpush1.msra.mxu0 0.0
    %1683 = vmatprep.subr.mxu0 0.0
    %1684 = vmatpush1.msra.mxu0 0.0
    %1685 = vmatprep.subr.mxu0 0.0
    %1686 = vmatpush1.msra.mxu0 0.0
    %1687 = vmatprep.subr.mxu0 0.0
    %1688 = vmatpush1.msra.mxu0 0.0
    %1689 = vmatprep.subr.mxu0 0.0
    %1690 = vmatpush1.msra.mxu0 0.0
    %1691 = vmatprep.subr.mxu0 0.0
    %1692 = vmatpush1.msra.mxu0 0.0
    %1693 = vmatprep.subr.mxu0 0.0
    %1694 = vmatpush1.msra.mxu0 0.0
    %1695 = vmatprep.subr.mxu0 0.0
    %1696 = vmatpush1.msra.mxu0 0.0
    %1697 = vmatprep.subr.mxu0 0.0
    %1698 = vmatpush1.msra.mxu0 0.0
    %1699 = vmatprep.mubr.f32.mxu0 0.0
    %1700 = vmatmul.mubr.f32.gmra.mrb[0].mxu0 %v1633
    %v1701 = vpop.f32.mrb[0].mxu0
    %v1702 = vadd.f32 %v1485, %v1701
    %v1703 = vpop.f32.mrb[0].mxu0
    %1704 = vdwg.mxu0
    %v1706 = vsel %vm1558, %v1368, 0
    %1708 = vmatprep.subr.mxu0 0.0
    %1709 = vmatpush1.msra.mxu0 %v1390
    %1710 = vmatprep.subr.mxu0 0.0
    %1711 = vmatpush1.msra.mxu0 %v1391
    %1712 = vmatprep.subr.mxu0 0.0
    %1713 = vmatpush1.msra.mxu0 %v1392
    %1714 = vmatprep.subr.mxu0 0.0
    %1715 = vmatpush1.msra.mxu0 %v1393
    %1716 = vmatprep.subr.mxu0 0.0
    %1717 = vmatpush1.msra.mxu0 0.0
    %1718 = vmatprep.subr.mxu0 0.0
    %1719 = vmatpush1.msra.mxu0 0.0
    %1720 = vmatprep.subr.mxu0 0.0
    %1721 = vmatpush1.msra.mxu0 0.0
    %1722 = vmatprep.subr.mxu0 0.0
    %1723 = vmatpush1.msra.mxu0 0.0
    %1724 = vmatprep.subr.mxu0 0.0
    %1725 = vmatpush1.msra.mxu0 0.0
    %1726 = vmatprep.subr.mxu0 0.0
    %1727 = vmatpush1.msra.mxu0 0.0
    %1728 = vmatprep.subr.mxu0 0.0
    %1729 = vmatpush1.msra.mxu0 0.0
    %1730 = vmatprep.subr.mxu0 0.0
    %1731 = vmatpush1.msra.mxu0 0.0
    %1732 = vmatprep.subr.mxu0 0.0
    %1733 = vmatpush1.msra.mxu0 0.0
    %1734 = vmatprep.subr.mxu0 0.0
    %1735 = vmatpush1.msra.mxu0 0.0
    %1736 = vmatprep.subr.mxu0 0.0
    %1737 = vmatpush1.msra.mxu0 0.0
    %1738 = vmatprep.subr.mxu0 0.0
    %1739 = vmatpush1.msra.mxu0 0.0
    %1740 = vmatprep.subr.mxu0 0.0
    %1741 = vmatpush1.msra.mxu0 0.0
    %1742 = vmatprep.subr.mxu0 0.0
    %1743 = vmatpush1.msra.mxu0 0.0
    %1744 = vmatprep.subr.mxu0 0.0
    %1745 = vmatpush1.msra.mxu0 0.0
    %1746 = vmatprep.subr.mxu0 0.0
    %1747 = vmatpush1.msra.mxu0 0.0
    %1748 = vmatprep.subr.mxu0 0.0
    %1749 = vmatpush1.msra.mxu0 0.0
    %1750 = vmatprep.subr.mxu0 0.0
    %1751 = vmatpush1.msra.mxu0 0.0
    %1752 = vmatprep.subr.mxu0 0.0
    %1753 = vmatpush1.msra.mxu0 0.0
    %1754 = vmatprep.subr.mxu0 0.0
    %1755 = vmatpush1.msra.mxu0 0.0
    %1756 = vmatprep.subr.mxu0 0.0
    %1757 = vmatpush1.msra.mxu0 0.0
    %1758 = vmatprep.subr.mxu0 0.0
    %1759 = vmatpush1.msra.mxu0 0.0
    %1760 = vmatprep.subr.mxu0 0.0
    %1761 = vmatpush1.msra.mxu0 0.0
    %1762 = vmatprep.subr.mxu0 0.0
    %1763 = vmatpush1.msra.mxu0 0.0
    %1764 = vmatprep.subr.mxu0 0.0
    %1765 = vmatpush1.msra.mxu0 0.0
    %1766 = vmatprep.subr.mxu0 0.0
    %1767 = vmatpush1.msra.mxu0 0.0
    %1768 = vmatprep.subr.mxu0 0.0
    %1769 = vmatpush1.msra.mxu0 0.0
    %1770 = vmatprep.subr.mxu0 0.0
    %1771 = vmatpush1.msra.mxu0 0.0
    %1772 = vmatprep.mubr.f32.mxu0 0.0
    %1773 = vmatmul.mubr.f32.gmra.mrb[0].mxu0 %v1706
    %v1774 = vpop.f32.mrb[0].mxu0
    %v1775 = vadd.f32 %v1489, %v1774
    %v1776 = vpop.f32.mrb[0].mxu0
    %1777 = vdwg.mxu0
    %v1779 = vsel %vm1558, %v1369, 0
    %1781 = vmatprep.subr.mxu0 0.0
    %1782 = vmatpush1.msra.mxu0 %v1394
    %1783 = vmatprep.subr.mxu0 0.0
    %1784 = vmatpush1.msra.mxu0 %v1395
    %1785 = vmatprep.subr.mxu0 0.0
    %1786 = vmatpush1.msra.mxu0 %v1396
    %1787 = vmatprep.subr.mxu0 0.0
    %1788 = vmatpush1.msra.mxu0 %v1397
    %1789 = vmatprep.subr.mxu0 0.0
    %1790 = vmatpush1.msra.mxu0 0.0
    %1791 = vmatprep.subr.mxu0 0.0
    %1792 = vmatpush1.msra.mxu0 0.0
    %1793 = vmatprep.subr.mxu0 0.0
    %1794 = vmatpush1.msra.mxu0 0.0
    %1795 = vmatprep.subr.mxu0 0.0
    %1796 = vmatpush1.msra.mxu0 0.0
    %1797 = vmatprep.subr.mxu0 0.0
    %1798 = vmatpush1.msra.mxu0 0.0
    %1799 = vmatprep.subr.mxu0 0.0
    %1800 = vmatpush1.msra.mxu0 0.0
    %1801 = vmatprep.subr.mxu0 0.0
    %1802 = vmatpush1.msra.mxu0 0.0
    %1803 = vmatprep.subr.mxu0 0.0
    %1804 = vmatpush1.msra.mxu0 0.0
    %1805 = vmatprep.subr.mxu0 0.0
    %1806 = vmatpush1.msra.mxu0 0.0
    %1807 = vmatprep.subr.mxu0 0.0
    %1808 = vmatpush1.msra.mxu0 0.0
    %1809 = vmatprep.subr.mxu0 0.0
    %1810 = vmatpush1.msra.mxu0 0.0
    %1811 = vmatprep.subr.mxu0 0.0
    %1812 = vmatpush1.msra.mxu0 0.0
    %1813 = vmatprep.subr.mxu0 0.0
    %1814 = vmatpush1.msra.mxu0 0.0
    %1815 = vmatprep.subr.mxu0 0.0
    %1816 = vmatpush1.msra.mxu0 0.0
    %1817 = vmatprep.subr.mxu0 0.0
    %1818 = vmatpush1.msra.mxu0 0.0
    %1819 = vmatprep.subr.mxu0 0.0
    %1820 = vmatpush1.msra.mxu0 0.0
    %1821 = vmatprep.subr.mxu0 0.0
    %1822 = vmatpush1.msra.mxu0 0.0
    %1823 = vmatprep.subr.mxu0 0.0
    %1824 = vmatpush1.msra.mxu0 0.0
    %1825 = vmatprep.subr.mxu0 0.0
    %1826 = vmatpush1.msra.mxu0 0.0
    %1827 = vmatprep.subr.mxu0 0.0
    %1828 = vmatpush1.msra.mxu0 0.0
    %1829 = vmatprep.subr.mxu0 0.0
    %1830 = vmatpush1.msra.mxu0 0.0
    %1831 = vmatprep.subr.mxu0 0.0
    %1832 = vmatpush1.msra.mxu0 0.0
    %1833 = vmatprep.subr.mxu0 0.0
    %1834 = vmatpush1.msra.mxu0 0.0
    %1835 = vmatprep.subr.mxu0 0.0
    %1836 = vmatpush1.msra.mxu0 0.0
    %1837 = vmatprep.subr.mxu0 0.0
    %1838 = vmatpush1.msra.mxu0 0.0
    %1839 = vmatprep.subr.mxu0 0.0
    %1840 = vmatpush1.msra.mxu0 0.0
    %1841 = vmatprep.subr.mxu0 0.0
    %1842 = vmatpush1.msra.mxu0 0.0
    %1843 = vmatprep.subr.mxu0 0.0
    %1844 = vmatpush1.msra.mxu0 0.0
    %1845 = vmatprep.mubr.f32.mxu0 0.0
    %1846 = vmatmul.mubr.f32.gmra.mrb[0].mxu0 %v1779
    %v1847 = vpop.f32.mrb[0].mxu0
    %v1848 = vadd.f32 %v1493, %v1847
    %v1849 = vpop.f32.mrb[0].mxu0
    %1850 = vdwg.mxu0
    %v1852 = vsel %vm1558, %v1370, 0
    %1854 = vmatprep.subr.mxu0 0.0
    %1855 = vmatpush1.msra.mxu0 %v1398
    %1856 = vmatprep.subr.mxu0 0.0
    %1857 = vmatpush1.msra.mxu0 %v1399
    %1858 = vmatprep.subr.mxu0 0.0
    %1859 = vmatpush1.msra.mxu0 %v1400
    %1860 = vmatprep.subr.mxu0 0.0
    %1861 = vmatpush1.msra.mxu0 %v1401
    %1862 = vmatprep.subr.mxu0 0.0
    %1863 = vmatpush1.msra.mxu0 0.0
    %1864 = vmatprep.subr.mxu0 0.0
    %1865 = vmatpush1.msra.mxu0 0.0
    %1866 = vmatprep.subr.mxu0 0.0
    %1867 = vmatpush1.msra.mxu0 0.0
    %1868 = vmatprep.subr.mxu0 0.0
    %1869 = vmatpush1.msra.mxu0 0.0
    %1870 = vmatprep.subr.mxu0 0.0
    %1871 = vmatpush1.msra.mxu0 0.0
    %1872 = vmatprep.subr.mxu0 0.0
    %1873 = vmatpush1.msra.mxu0 0.0
    %1874 = vmatprep.subr.mxu0 0.0
    %1875 = vmatpush1.msra.mxu0 0.0
    %1876 = vmatprep.subr.mxu0 0.0
    %1877 = vmatpush1.msra.mxu0 0.0
    %1878 = vmatprep.subr.mxu0 0.0
    %1879 = vmatpush1.msra.mxu0 0.0
    %1880 = vmatprep.subr.mxu0 0.0
    %1881 = vmatpush1.msra.mxu0 0.0
    %1882 = vmatprep.subr.mxu0 0.0
    %1883 = vmatpush1.msra.mxu0 0.0
    %1884 = vmatprep.subr.mxu0 0.0
    %1885 = vmatpush1.msra.mxu0 0.0
    %1886 = vmatprep.subr.mxu0 0.0
    %1887 = vmatpush1.msra.mxu0 0.0
    %1888 = vmatprep.subr.mxu0 0.0
    %1889 = vmatpush1.msra.mxu0 0.0
    %1890 = vmatprep.subr.mxu0 0.0
    %1891 = vmatpush1.msra.mxu0 0.0
    %1892 = vmatprep.subr.mxu0 0.0
    %1893 = vmatpush1.msra.mxu0 0.0
    %1894 = vmatprep.subr.mxu0 0.0
    %1895 = vmatpush1.msra.mxu0 0.0
    %1896 = vmatprep.subr.mxu0 0.0
    %1897 = vmatpush1.msra.mxu0 0.0
    %1898 = vmatprep.subr.mxu0 0.0
    %1899 = vmatpush1.msra.mxu0 0.0
    %1900 = vmatprep.subr.mxu0 0.0
    %1901 = vmatpush1.msra.mxu0 0.0
    %1902 = vmatprep.subr.mxu0 0.0
    %1903 = vmatpush1.msra.mxu0 0.0
    %1904 = vmatprep.subr.mxu0 0.0
    %1905 = vmatpush1.msra.mxu0 0.0
    %1906 = vmatprep.subr.mxu0 0.0
    %1907 = vmatpush1.msra.mxu0 0.0
    %1908 = vmatprep.subr.mxu0 0.0
    %1909 = vmatpush1.msra.mxu0 0.0
    %1910 = vmatprep.subr.mxu0 0.0
    %1911 = vmatpush1.msra.mxu0 0.0
    %1912 = vmatprep.subr.mxu0 0.0
    %1913 = vmatpush1.msra.mxu0 0.0
    %1914 = vmatprep.subr.mxu0 0.0
    %1915 = vmatpush1.msra.mxu0 0.0
    %1916 = vmatprep.subr.mxu0 0.0
    %1917 = vmatpush1.msra.mxu0 0.0
    %1918 = vmatprep.mubr.f32.mxu0 0.0
    %1919 = vmatmul.mubr.f32.gmra.mrb[0].mxu0 %v1852
    %v1920 = vpop.f32.mrb[0].mxu0
    %v1921 = vadd.f32 %v1497, %v1920
    %v1922 = vpop.f32.mrb[0].mxu0
    %1923 = vdwg.mxu0
    %v1925 = vsel %vm1558, %v1371, 0
    %1927 = vmatprep.subr.mxu0 0.0
    %1928 = vmatpush1.msra.mxu0 %v1402
    %1929 = vmatprep.subr.mxu0 0.0
    %1930 = vmatpush1.msra.mxu0 %v1403
    %1931 = vmatprep.subr.mxu0 0.0
    %1932 = vmatpush1.msra.mxu0 %v1404
    %1933 = vmatprep.subr.mxu0 0.0
    %1934 = vmatpush1.msra.mxu0 %v1405
    %1935 = vmatprep.subr.mxu0 0.0
    %1936 = vmatpush1.msra.mxu0 0.0
    %1937 = vmatprep.subr.mxu0 0.0
    %1938 = vmatpush1.msra.mxu0 0.0
    %1939 = vmatprep.subr.mxu0 0.0
    %1940 = vmatpush1.msra.mxu0 0.0
    %1941 = vmatprep.subr.mxu0 0.0
    %1942 = vmatpush1.msra.mxu0 0.0
    %1943 = vmatprep.subr.mxu0 0.0
    %1944 = vmatpush1.msra.mxu0 0.0
    %1945 = vmatprep.subr.mxu0 0.0
    %1946 = vmatpush1.msra.mxu0 0.0
    %1947 = vmatprep.subr.mxu0 0.0
    %1948 = vmatpush1.msra.mxu0 0.0
    %1949 = vmatprep.subr.mxu0 0.0
    %1950 = vmatpush1.msra.mxu0 0.0
    %1951 = vmatprep.subr.mxu0 0.0
    %1952 = vmatpush1.msra.mxu0 0.0
    %1953 = vmatprep.subr.mxu0 0.0
    %1954 = vmatpush1.msra.mxu0 0.0
    %1955 = vmatprep.subr.mxu0 0.0
    %1956 = vmatpush1.msra.mxu0 0.0
    %1957 = vmatprep.subr.mxu0 0.0
    %1958 = vmatpush1.msra.mxu0 0.0
    %1959 = vmatprep.subr.mxu0 0.0
    %1960 = vmatpush1.msra.mxu0 0.0
    %1961 = vmatprep.subr.mxu0 0.0
    %1962 = vmatpush1.msra.mxu0 0.0
    %1963 = vmatprep.subr.mxu0 0.0
    %1964 = vmatpush1.msra.mxu0 0.0
    %1965 = vmatprep.subr.mxu0 0.0
    %1966 = vmatpush1.msra.mxu0 0.0
    %1967 = vmatprep.subr.mxu0 0.0
    %1968 = vmatpush1.msra.mxu0 0.0
    %1969 = vmatprep.subr.mxu0 0.0
    %1970 = vmatpush1.msra.mxu0 0.0
    %1971 = vmatprep.subr.mxu0 0.0
    %1972 = vmatpush1.msra.mxu0 0.0
    %1973 = vmatprep.subr.mxu0 0.0
    %1974 = vmatpush1.msra.mxu0 0.0
    %1975 = vmatprep.subr.mxu0 0.0
    %1976 = vmatpush1.msra.mxu0 0.0
    %1977 = vmatprep.subr.mxu0 0.0
    %1978 = vmatpush1.msra.mxu0 0.0
    %1979 = vmatprep.subr.mxu0 0.0
    %1980 = vmatpush1.msra.mxu0 0.0
    %1981 = vmatprep.subr.mxu0 0.0
    %1982 = vmatpush1.msra.mxu0 0.0
    %1983 = vmatprep.subr.mxu0 0.0
    %1984 = vmatpush1.msra.mxu0 0.0
    %1985 = vmatprep.subr.mxu0 0.0
    %1986 = vmatpush1.msra.mxu0 0.0
    %1987 = vmatprep.subr.mxu0 0.0
    %1988 = vmatpush1.msra.mxu0 0.0
    %1989 = vmatprep.subr.mxu0 0.0
    %1990 = vmatpush1.msra.mxu0 0.0
    %1991 = vmatprep.mubr.f32.mxu0 0.0
    %1992 = vmatmul.mubr.f32.gmra.mrb[0].mxu0 %v1925
    %v1993 = vpop.f32.mrb[0].mxu0
    %v1994 = vadd.f32 %v1501, %v1993
    %v1995 = vpop.f32.mrb[0].mxu0
    %1996 = vdwg.mxu0
    %v1998 = vsel %vm1558, %v1372, 0
    %2000 = vmatprep.subr.mxu0 0.0
    %2001 = vmatpush1.msra.mxu0 %v1406
    %2002 = vmatprep.subr.mxu0 0.0
    %2003 = vmatpush1.msra.mxu0 %v1407
    %2004 = vmatprep.subr.mxu0 0.0
    %2005 = vmatpush1.msra.mxu0 %v1408
    %2006 = vmatprep.subr.mxu0 0.0
    %2007 = vmatpush1.msra.mxu0 %v1409
    %2008 = vmatprep.subr.mxu0 0.0
    %2009 = vmatpush1.msra.mxu0 0.0
    %2010 = vmatprep.subr.mxu0 0.0
    %2011 = vmatpush1.msra.mxu0 0.0
    %2012 = vmatprep.subr.mxu0 0.0
    %2013 = vmatpush1.msra.mxu0 0.0
    %2014 = vmatprep.subr.mxu0 0.0
    %2015 = vmatpush1.msra.mxu0 0.0
    %2016 = vmatprep.subr.mxu0 0.0
    %2017 = vmatpush1.msra.mxu0 0.0
    %2018 = vmatprep.subr.mxu0 0.0
    %2019 = vmatpush1.msra.mxu0 0.0
    %2020 = vmatprep.subr.mxu0 0.0
    %2021 = vmatpush1.msra.mxu0 0.0
    %2022 = vmatprep.subr.mxu0 0.0
    %2023 = vmatpush1.msra.mxu0 0.0
    %2024 = vmatprep.subr.mxu0 0.0
    %2025 = vmatpush1.msra.mxu0 0.0
    %2026 = vmatprep.subr.mxu0 0.0
    %2027 = vmatpush1.msra.mxu0 0.0
    %2028 = vmatprep.subr.mxu0 0.0
    %2029 = vmatpush1.msra.mxu0 0.0
    %2030 = vmatprep.subr.mxu0 0.0
    %2031 = vmatpush1.msra.mxu0 0.0
    %2032 = vmatprep.subr.mxu0 0.0
    %2033 = vmatpush1.msra.mxu0 0.0
    %2034 = vmatprep.subr.mxu0 0.0
    %2035 = vmatpush1.msra.mxu0 0.0
    %2036 = vmatprep.subr.mxu0 0.0
    %2037 = vmatpush1.msra.mxu0 0.0
    %2038 = vmatprep.subr.mxu0 0.0
    %2039 = vmatpush1.msra.mxu0 0.0
    %2040 = vmatprep.subr.mxu0 0.0
    %2041 = vmatpush1.msra.mxu0 0.0
    %2042 = vmatprep.subr.mxu0 0.0
    %2043 = vmatpush1.msra.mxu0 0.0
    %2044 = vmatprep.subr.mxu0 0.0
    %2045 = vmatpush1.msra.mxu0 0.0
    %2046 = vmatprep.subr.mxu0 0.0
    %2047 = vmatpush1.msra.mxu0 0.0
    %2048 = vmatprep.subr.mxu0 0.0
    %2049 = vmatpush1.msra.mxu0 0.0
    %2050 = vmatprep.subr.mxu0 0.0
    %2051 = vmatpush1.msra.mxu0 0.0
    %2052 = vmatprep.subr.mxu0 0.0
    %2053 = vmatpush1.msra.mxu0 0.0
    %2054 = vmatprep.subr.mxu0 0.0
    %2055 = vmatpush1.msra.mxu0 0.0
    %2056 = vmatprep.subr.mxu0 0.0
    %2057 = vmatpush1.msra.mxu0 0.0
    %2058 = vmatprep.subr.mxu0 0.0
    %2059 = vmatpush1.msra.mxu0 0.0
    %2060 = vmatprep.subr.mxu0 0.0
    %2061 = vmatpush1.msra.mxu0 0.0
    %2062 = vmatprep.subr.mxu0 0.0
    %2063 = vmatpush1.msra.mxu0 0.0
    %2064 = vmatprep.mubr.f32.mxu0 0.0
    %2065 = vmatmul.mubr.f32.gmra.mrb[0].mxu0 %v1998
    %v2066 = vpop.f32.mrb[0].mxu0
    %v2067 = vadd.f32 %v1505, %v2066
    %v2068 = vpop.f32.mrb[0].mxu0
    %2069 = vdwg.mxu0
    %v2071 = vsel %vm1558, %v1373, 0
    %2073 = vmatprep.subr.mxu0 0.0
    %2074 = vmatpush1.msra.mxu0 %v1410
    %2075 = vmatprep.subr.mxu0 0.0
    %2076 = vmatpush1.msra.mxu0 %v1411
    %2077 = vmatprep.subr.mxu0 0.0
    %2078 = vmatpush1.msra.mxu0 %v1412
    %2079 = vmatprep.subr.mxu0 0.0
    %2080 = vmatpush1.msra.mxu0 %v1413
    %2081 = vmatprep.subr.mxu0 0.0
    %2082 = vmatpush1.msra.mxu0 0.0
    %2083 = vmatprep.subr.mxu0 0.0
    %2084 = vmatpush1.msra.mxu0 0.0
    %2085 = vmatprep.subr.mxu0 0.0
    %2086 = vmatpush1.msra.mxu0 0.0
    %2087 = vmatprep.subr.mxu0 0.0
    %2088 = vmatpush1.msra.mxu0 0.0
    %2089 = vmatprep.subr.mxu0 0.0
    %2090 = vmatpush1.msra.mxu0 0.0
    %2091 = vmatprep.subr.mxu0 0.0
    %2092 = vmatpush1.msra.mxu0 0.0
    %2093 = vmatprep.subr.mxu0 0.0
    %2094 = vmatpush1.msra.mxu0 0.0
    %2095 = vmatprep.subr.mxu0 0.0
    %2096 = vmatpush1.msra.mxu0 0.0
    %2097 = vmatprep.subr.mxu0 0.0
    %2098 = vmatpush1.msra.mxu0 0.0
    %2099 = vmatprep.subr.mxu0 0.0
    %2100 = vmatpush1.msra.mxu0 0.0
    %2101 = vmatprep.subr.mxu0 0.0
    %2102 = vmatpush1.msra.mxu0 0.0
    %2103 = vmatprep.subr.mxu0 0.0
    %2104 = vmatpush1.msra.mxu0 0.0
    %2105 = vmatprep.subr.mxu0 0.0
    %2106 = vmatpush1.msra.mxu0 0.0
    %2107 = vmatprep.subr.mxu0 0.0
    %2108 = vmatpush1.msra.mxu0 0.0
    %2109 = vmatprep.subr.mxu0 0.0
    %2110 = vmatpush1.msra.mxu0 0.0
    %2111 = vmatprep.subr.mxu0 0.0
    %2112 = vmatpush1.msra.mxu0 0.0
    %2113 = vmatprep.subr.mxu0 0.0
    %2114 = vmatpush1.msra.mxu0 0.0
    %2115 = vmatprep.subr.mxu0 0.0
    %2116 = vmatpush1.msra.mxu0 0.0
    %2117 = vmatprep.subr.mxu0 0.0
    %2118 = vmatpush1.msra.mxu0 0.0
    %2119 = vmatprep.subr.mxu0 0.0
    %2120 = vmatpush1.msra.mxu0 0.0
    %2121 = vmatprep.subr.mxu0 0.0
    %2122 = vmatpush1.msra.mxu0 0.0
    %2123 = vmatprep.subr.mxu0 0.0
    %2124 = vmatpush1.msra.mxu0 0.0
    %2125 = vmatprep.subr.mxu0 0.0
    %2126 = vmatpush1.msra.mxu0 0.0
    %2127 = vmatprep.subr.mxu0 0.0
    %2128 = vmatpush1.msra.mxu0 0.0
    %2129 = vmatprep.subr.mxu0 0.0
    %2130 = vmatpush1.msra.mxu0 0.0
    %2131 = vmatprep.subr.mxu0 0.0
    %2132 = vmatpush1.msra.mxu0 0.0
    %2133 = vmatprep.subr.mxu0 0.0
    %2134 = vmatpush1.msra.mxu0 0.0
    %2135 = vmatprep.subr.mxu0 0.0
    %2136 = vmatpush1.msra.mxu0 0.0
    %2137 = vmatprep.mubr.f32.mxu0 0.0
    %2138 = vmatmul.mubr.f32.gmra.mrb[0].mxu0 %v2071
    %v2139 = vpop.f32.mrb[0].mxu0
    %v2140 = vadd.f32 %v1509, %v2139
    %v2141 = vpop.f32.mrb[0].mxu0
    %2142 = vdwg.mxu0
    %v2144 = vsel %vm1558, %v1374, 0
    %2146 = vmatprep.subr.mxu0 0.0
    %2147 = vmatpush1.msra.mxu0 %v1414
    %2148 = vmatprep.subr.mxu0 0.0
    %2149 = vmatpush1.msra.mxu0 %v1415
    %2150 = vmatprep.subr.mxu0 0.0
    %2151 = vmatpush1.msra.mxu0 %v1416
    %2152 = vmatprep.subr.mxu0 0.0
    %2153 = vmatpush1.msra.mxu0 %v1417
    %2154 = vmatprep.subr.mxu0 0.0
    %2155 = vmatpush1.msra.mxu0 0.0
    %2156 = vmatprep.subr.mxu0 0.0
    %2157 = vmatpush1.msra.mxu0 0.0
    %2158 = vmatprep.subr.mxu0 0.0
    %2159 = vmatpush1.msra.mxu0 0.0
    %2160 = vmatprep.subr.mxu0 0.0
    %2161 = vmatpush1.msra.mxu0 0.0
    %2162 = vmatprep.subr.mxu0 0.0
    %2163 = vmatpush1.msra.mxu0 0.0
    %2164 = vmatprep.subr.mxu0 0.0
    %2165 = vmatpush1.msra.mxu0 0.0
    %2166 = vmatprep.subr.mxu0 0.0
    %2167 = vmatpush1.msra.mxu0 0.0
    %2168 = vmatprep.subr.mxu0 0.0
    %2169 = vmatpush1.msra.mxu0 0.0
    %2170 = vmatprep.subr.mxu0 0.0
    %2171 = vmatpush1.msra.mxu0 0.0
    %2172 = vmatprep.subr.mxu0 0.0
    %2173 = vmatpush1.msra.mxu0 0.0
    %2174 = vmatprep.subr.mxu0 0.0
    %2175 = vmatpush1.msra.mxu0 0.0
    %2176 = vmatprep.subr.mxu0 0.0
    %2177 = vmatpush1.msra.mxu0 0.0
    %2178 = vmatprep.subr.mxu0 0.0
    %2179 = vmatpush1.msra.mxu0 0.0
    %2180 = vmatprep.subr.mxu0 0.0
    %2181 = vmatpush1.msra.mxu0 0.0
    %2182 = vmatprep.subr.mxu0 0.0
    %2183 = vmatpush1.msra.mxu0 0.0
    %2184 = vmatprep.subr.mxu0 0.0
    %2185 = vmatpush1.msra.mxu0 0.0
    %2186 = vmatprep.subr.mxu0 0.0
    %2187 = vmatpush1.msra.mxu0 0.0
    %2188 = vmatprep.subr.mxu0 0.0
    %2189 = vmatpush1.msra.mxu0 0.0
    %2190 = vmatprep.subr.mxu0 0.0
    %2191 = vmatpush1.msra.mxu0 0.0
    %2192 = vmatprep.subr.mxu0 0.0
    %2193 = vmatpush1.msra.mxu0 0.0
    %2194 = vmatprep.subr.mxu0 0.0
    %2195 = vmatpush1.msra.mxu0 0.0
    %2196 = vmatprep.subr.mxu0 0.0
    %2197 = vmatpush1.msra.mxu0 0.0
    %2198 = vmatprep.subr.mxu0 0.0
    %2199 = vmatpush1.msra.mxu0 0.0
    %2200 = vmatprep.subr.mxu0 0.0
    %2201 = vmatpush1.msra.mxu0 0.0
    %2202 = vmatprep.subr.mxu0 0.0
    %2203 = vmatpush1.msra.mxu0 0.0
    %2204 = vmatprep.subr.mxu0 0.0
    %2205 = vmatpush1.msra.mxu0 0.0
    %2206 = vmatprep.subr.mxu0 0.0
    %2207 = vmatpush1.msra.mxu0 0.0
    %2208 = vmatprep.subr.mxu0 0.0
    %2209 = vmatpush1.msra.mxu0 0.0
    %2210 = vmatprep.mubr.f32.mxu0 0.0
    %2211 = vmatmul.mubr.f32.gmra.mrb[0].mxu0 %v2144
    %v2212 = vpop.f32.mrb[0].mxu0
    %v2213 = vadd.f32 %v1513, %v2212
    %v2214 = vpop.f32.mrb[0].mxu0
    %2215 = vdwg.mxu0
    %v2217 = vsel %vm1558, %v1375, 0
    %2219 = vmatprep.subr.mxu0 0.0
    %2220 = vmatpush1.msra.mxu0 %v1418
    %2221 = vmatprep.subr.mxu0 0.0
    %2222 = vmatpush1.msra.mxu0 %v1419
    %2223 = vmatprep.subr.mxu0 0.0
    %2224 = vmatpush1.msra.mxu0 %v1420
    %2225 = vmatprep.subr.mxu0 0.0
    %2226 = vmatpush1.msra.mxu0 %v1421
    %2227 = vmatprep.subr.mxu0 0.0
    %2228 = vmatpush1.msra.mxu0 0.0
    %2229 = vmatprep.subr.mxu0 0.0
    %2230 = vmatpush1.msra.mxu0 0.0
    %2231 = vmatprep.subr.mxu0 0.0
    %2232 = vmatpush1.msra.mxu0 0.0
    %2233 = vmatprep.subr.mxu0 0.0
    %2234 = vmatpush1.msra.mxu0 0.0
    %2235 = vmatprep.subr.mxu0 0.0
    %2236 = vmatpush1.msra.mxu0 0.0
    %2237 = vmatprep.subr.mxu0 0.0
    %2238 = vmatpush1.msra.mxu0 0.0
    %2239 = vmatprep.subr.mxu0 0.0
    %2240 = vmatpush1.msra.mxu0 0.0
    %2241 = vmatprep.subr.mxu0 0.0
    %2242 = vmatpush1.msra.mxu0 0.0
    %2243 = vmatprep.subr.mxu0 0.0
    %2244 = vmatpush1.msra.mxu0 0.0
    %2245 = vmatprep.subr.mxu0 0.0
    %2246 = vmatpush1.msra.mxu0 0.0
    %2247 = vmatprep.subr.mxu0 0.0
    %2248 = vmatpush1.msra.mxu0 0.0
    %2249 = vmatprep.subr.mxu0 0.0
    %2250 = vmatpush1.msra.mxu0 0.0
    %2251 = vmatprep.subr.mxu0 0.0
    %2252 = vmatpush1.msra.mxu0 0.0
    %2253 = vmatprep.subr.mxu0 0.0
    %2254 = vmatpush1.msra.mxu0 0.0
    %2255 = vmatprep.subr.mxu0 0.0
    %2256 = vmatpush1.msra.mxu0 0.0
    %2257 = vmatprep.subr.mxu0 0.0
    %2258 = vmatpush1.msra.mxu0 0.0
    %2259 = vmatprep.subr.mxu0 0.0
    %2260 = vmatpush1.msra.mxu0 0.0
    %2261 = vmatprep.subr.mxu0 0.0
    %2262 = vmatpush1.msra.mxu0 0.0
    %2263 = vmatprep.subr.mxu0 0.0
    %2264 = vmatpush1.msra.mxu0 0.0
    %2265 = vmatprep.subr.mxu0 0.0
    %2266 = vmatpush1.msra.mxu0 0.0
    %2267 = vmatprep.subr.mxu0 0.0
    %2268 = vmatpush1.msra.mxu0 0.0
    %2269 = vmatprep.subr.mxu0 0.0
    %2270 = vmatpush1.msra.mxu0 0.0
    %2271 = vmatprep.subr.mxu0 0.0
    %2272 = vmatpush1.msra.mxu0 0.0
    %2273 = vmatprep.subr.mxu0 0.0
    %2274 = vmatpush1.msra.mxu0 0.0
    %2275 = vmatprep.subr.mxu0 0.0
    %2276 = vmatpush1.msra.mxu0 0.0
    %2277 = vmatprep.subr.mxu0 0.0
    %2278 = vmatpush1.msra.mxu0 0.0
    %2279 = vmatprep.subr.mxu0 0.0
    %2280 = vmatpush1.msra.mxu0 0.0
    %2281 = vmatprep.subr.mxu0 0.0
    %2282 = vmatpush1.msra.mxu0 0.0
    %2283 = vmatprep.mubr.f32.mxu0 0.0
    %2284 = vmatmul.mubr.f32.gmra.mrb[0].mxu0 %v2217
    %v2285 = vpop.f32.mrb[0].mxu0
    %v2286 = vadd.f32 %v1517, %v2285
    %v2287 = vpop.f32.mrb[0].mxu0
    %2288 = vdwg.mxu0
    %v2290 = vsel %vm1558, %v1376, 0
    %2292 = vmatprep.subr.mxu0 0.0
    %2293 = vmatpush1.msra.mxu0 %v1422
    %2294 = vmatprep.subr.mxu0 0.0
    %2295 = vmatpush1.msra.mxu0 %v1423
    %2296 = vmatprep.subr.mxu0 0.0
    %2297 = vmatpush1.msra.mxu0 %v1424
    %2298 = vmatprep.subr.mxu0 0.0
    %2299 = vmatpush1.msra.mxu0 %v1425
    %2300 = vmatprep.subr.mxu0 0.0
    %2301 = vmatpush1.msra.mxu0 0.0
    %2302 = vmatprep.subr.mxu0 0.0
    %2303 = vmatpush1.msra.mxu0 0.0
    %2304 = vmatprep.subr.mxu0 0.0
    %2305 = vmatpush1.msra.mxu0 0.0
    %2306 = vmatprep.subr.mxu0 0.0
    %2307 = vmatpush1.msra.mxu0 0.0
    %2308 = vmatprep.subr.mxu0 0.0
    %2309 = vmatpush1.msra.mxu0 0.0
    %2310 = vmatprep.subr.mxu0 0.0
    %2311 = vmatpush1.msra.mxu0 0.0
    %2312 = vmatprep.subr.mxu0 0.0
    %2313 = vmatpush1.msra.mxu0 0.0
    %2314 = vmatprep.subr.mxu0 0.0
    %2315 = vmatpush1.msra.mxu0 0.0
    %2316 = vmatprep.subr.mxu0 0.0
    %2317 = vmatpush1.msra.mxu0 0.0
    %2318 = vmatprep.subr.mxu0 0.0
    %2319 = vmatpush1.msra.mxu0 0.0
    %2320 = vmatprep.subr.mxu0 0.0
    %2321 = vmatpush1.msra.mxu0 0.0
    %2322 = vmatprep.subr.mxu0 0.0
    %2323 = vmatpush1.msra.mxu0 0.0
    %2324 = vmatprep.subr.mxu0 0.0
    %2325 = vmatpush1.msra.mxu0 0.0
    %2326 = vmatprep.subr.mxu0 0.0
    %2327 = vmatpush1.msra.mxu0 0.0
    %2328 = vmatprep.subr.mxu0 0.0
    %2329 = vmatpush1.msra.mxu0 0.0
    %2330 = vmatprep.subr.mxu0 0.0
    %2331 = vmatpush1.msra.mxu0 0.0
    %2332 = vmatprep.subr.mxu0 0.0
    %2333 = vmatpush1.msra.mxu0 0.0
    %2334 = vmatprep.subr.mxu0 0.0
    %2335 = vmatpush1.msra.mxu0 0.0
    %2336 = vmatprep.subr.mxu0 0.0
    %2337 = vmatpush1.msra.mxu0 0.0
    %2338 = vmatprep.subr.mxu0 0.0
    %2339 = vmatpush1.msra.mxu0 0.0
    %2340 = vmatprep.subr.mxu0 0.0
    %2341 = vmatpush1.msra.mxu0 0.0
    %2342 = vmatprep.subr.mxu0 0.0
    %2343 = vmatpush1.msra.mxu0 0.0
    %2344 = vmatprep.subr.mxu0 0.0
    %2345 = vmatpush1.msra.mxu0 0.0
    %2346 = vmatprep.subr.mxu0 0.0
    %2347 = vmatpush1.msra.mxu0 0.0
    %2348 = vmatprep.subr.mxu0 0.0
    %2349 = vmatpush1.msra.mxu0 0.0
    %2350 = vmatprep.subr.mxu0 0.0
    %2351 = vmatpush1.msra.mxu0 0.0
    %2352 = vmatprep.subr.mxu0 0.0
    %2353 = vmatpush1.msra.mxu0 0.0
    %2354 = vmatprep.subr.mxu0 0.0
    %2355 = vmatpush1.msra.mxu0 0.0
    %2356 = vmatprep.mubr.f32.mxu0 0.0
    %2357 = vmatmul.mubr.f32.gmra.mrb[0].mxu0 %v2290
    %v2358 = vpop.f32.mrb[0].mxu0
    %v2359 = vadd.f32 %v1521, %v2358
    %v2360 = vpop.f32.mrb[0].mxu0
    %2361 = vdwg.mxu0
    %v2363 = vsel %vm1558, %v1377, 0
    %2365 = vmatprep.subr.mxu0 0.0
    %2366 = vmatpush1.msra.mxu0 %v1426
    %2367 = vmatprep.subr.mxu0 0.0
    %2368 = vmatpush1.msra.mxu0 %v1427
    %2369 = vmatprep.subr.mxu0 0.0
    %2370 = vmatpush1.msra.mxu0 %v1428
    %2371 = vmatprep.subr.mxu0 0.0
    %2372 = vmatpush1.msra.mxu0 %v1429
    %2373 = vmatprep.subr.mxu0 0.0
    %2374 = vmatpush1.msra.mxu0 0.0
    %2375 = vmatprep.subr.mxu0 0.0
    %2376 = vmatpush1.msra.mxu0 0.0
    %2377 = vmatprep.subr.mxu0 0.0
    %2378 = vmatpush1.msra.mxu0 0.0
    %2379 = vmatprep.subr.mxu0 0.0
    %2380 = vmatpush1.msra.mxu0 0.0
    %2381 = vmatprep.subr.mxu0 0.0
    %2382 = vmatpush1.msra.mxu0 0.0
    %2383 = vmatprep.subr.mxu0 0.0
    %2384 = vmatpush1.msra.mxu0 0.0
    %2385 = vmatprep.subr.mxu0 0.0
    %2386 = vmatpush1.msra.mxu0 0.0
    %2387 = vmatprep.subr.mxu0 0.0
    %2388 = vmatpush1.msra.mxu0 0.0
    %2389 = vmatprep.subr.mxu0 0.0
    %2390 = vmatpush1.msra.mxu0 0.0
    %2391 = vmatprep.subr.mxu0 0.0
    %2392 = vmatpush1.msra.mxu0 0.0
    %2393 = vmatprep.subr.mxu0 0.0
    %2394 = vmatpush1.msra.mxu0 0.0
    %2395 = vmatprep.subr.mxu0 0.0
    %2396 = vmatpush1.msra.mxu0 0.0
    %2397 = vmatprep.subr.mxu0 0.0
    %2398 = vmatpush1.msra.mxu0 0.0
    %2399 = vmatprep.subr.mxu0 0.0
    %2400 = vmatpush1.msra.mxu0 0.0
    %2401 = vmatprep.subr.mxu0 0.0
    %2402 = vmatpush1.msra.mxu0 0.0
    %2403 = vmatprep.subr.mxu0 0.0
    %2404 = vmatpush1.msra.mxu0 0.0
    %2405 = vmatprep.subr.mxu0 0.0
    %2406 = vmatpush1.msra.mxu0 0.0
    %2407 = vmatprep.subr.mxu0 0.0
    %2408 = vmatpush1.msra.mxu0 0.0
    %2409 = vmatprep.subr.mxu0 0.0
    %2410 = vmatpush1.msra.mxu0 0.0
    %2411 = vmatprep.subr.mxu0 0.0
    %2412 = vmatpush1.msra.mxu0 0.0
    %2413 = vmatprep.subr.mxu0 0.0
    %2414 = vmatpush1.msra.mxu0 0.0
    %2415 = vmatprep.subr.mxu0 0.0
    %2416 = vmatpush1.msra.mxu0 0.0
    %2417 = vmatprep.subr.mxu0 0.0
    %2418 = vmatpush1.msra.mxu0 0.0
    %2419 = vmatprep.subr.mxu0 0.0
    %2420 = vmatpush1.msra.mxu0 0.0
    %2421 = vmatprep.subr.mxu0 0.0
    %2422 = vmatpush1.msra.mxu0 0.0
    %2423 = vmatprep.subr.mxu0 0.0
    %2424 = vmatpush1.msra.mxu0 0.0
    %2425 = vmatprep.subr.mxu0 0.0
    %2426 = vmatpush1.msra.mxu0 0.0
    %2427 = vmatprep.subr.mxu0 0.0
    %2428 = vmatpush1.msra.mxu0 0.0
    %2429 = vmatprep.mubr.f32.mxu0 0.0
    %2430 = vmatmul.mubr.f32.gmra.mrb[0].mxu0 %v2363
    %v2431 = vpop.f32.mrb[0].mxu0
    %v2432 = vadd.f32 %v1525, %v2431
    %v2433 = vpop.f32.mrb[0].mxu0
    %2434 = vdwg.mxu0
    %v2436 = vsel %vm1558, %v1378, 0
    %2438 = vmatprep.subr.mxu0 0.0
    %2439 = vmatpush1.msra.mxu0 %v1430
    %2440 = vmatprep.subr.mxu0 0.0
    %2441 = vmatpush1.msra.mxu0 %v1431
    %2442 = vmatprep.subr.mxu0 0.0
    %2443 = vmatpush1.msra.mxu0 %v1432
    %2444 = vmatprep.subr.mxu0 0.0
    %2445 = vmatpush1.msra.mxu0 %v1433
    %2446 = vmatprep.subr.mxu0 0.0
    %2447 = vmatpush1.msra.mxu0 0.0
    %2448 = vmatprep.subr.mxu0 0.0
    %2449 = vmatpush1.msra.mxu0 0.0
    %2450 = vmatprep.subr.mxu0 0.0
    %2451 = vmatpush1.msra.mxu0 0.0
    %2452 = vmatprep.subr.mxu0 0.0
    %2453 = vmatpush1.msra.mxu0 0.0
    %2454 = vmatprep.subr.mxu0 0.0
    %2455 = vmatpush1.msra.mxu0 0.0
    %2456 = vmatprep.subr.mxu0 0.0
    %2457 = vmatpush1.msra.mxu0 0.0
    %2458 = vmatprep.subr.mxu0 0.0
    %2459 = vmatpush1.msra.mxu0 0.0
    %2460 = vmatprep.subr.mxu0 0.0
    %2461 = vmatpush1.msra.mxu0 0.0
    %2462 = vmatprep.subr.mxu0 0.0
    %2463 = vmatpush1.msra.mxu0 0.0
    %2464 = vmatprep.subr.mxu0 0.0
    %2465 = vmatpush1.msra.mxu0 0.0
    %2466 = vmatprep.subr.mxu0 0.0
    %2467 = vmatpush1.msra.mxu0 0.0
    %2468 = vmatprep.subr.mxu0 0.0
    %2469 = vmatpush1.msra.mxu0 0.0
    %2470 = vmatprep.subr.mxu0 0.0
    %2471 = vmatpush1.msra.mxu0 0.0
    %2472 = vmatprep.subr.mxu0 0.0
    %2473 = vmatpush1.msra.mxu0 0.0
    %2474 = vmatprep.subr.mxu0 0.0
    %2475 = vmatpush1.msra.mxu0 0.0
    %2476 = vmatprep.subr.mxu0 0.0
    %2477 = vmatpush1.msra.mxu0 0.0
    %2478 = vmatprep.subr.mxu0 0.0
    %2479 = vmatpush1.msra.mxu0 0.0
    %2480 = vmatprep.subr.mxu0 0.0
    %2481 = vmatpush1.msra.mxu0 0.0
    %2482 = vmatprep.subr.mxu0 0.0
    %2483 = vmatpush1.msra.mxu0 0.0
    %2484 = vmatprep.subr.mxu0 0.0
    %2485 = vmatpush1.msra.mxu0 0.0
    %2486 = vmatprep.subr.mxu0 0.0
    %2487 = vmatpush1.msra.mxu0 0.0
    %2488 = vmatprep.subr.mxu0 0.0
    %2489 = vmatpush1.msra.mxu0 0.0
    %2490 = vmatprep.subr.mxu0 0.0
    %2491 = vmatpush1.msra.mxu0 0.0
    %2492 = vmatprep.subr.mxu0 0.0
    %2493 = vmatpush1.msra.mxu0 0.0
    %2494 = vmatprep.subr.mxu0 0.0
    %2495 = vmatpush1.msra.mxu0 0.0
    %2496 = vmatprep.subr.mxu0 0.0
    %2497 = vmatpush1.msra.mxu0 0.0
    %2498 = vmatprep.subr.mxu0 0.0
    %2499 = vmatpush1.msra.mxu0 0.0
    %2500 = vmatprep.subr.mxu0 0.0
    %2501 = vmatpush1.msra.mxu0 0.0
    %2502 = vmatprep.mubr.f32.mxu0 0.0
    %2503 = vmatmul.mubr.f32.gmra.mrb[0].mxu0 %v2436
    %v2504 = vpop.f32.mrb[0].mxu0
    %v2505 = vadd.f32 %v1529, %v2504
    %v2506 = vpop.f32.mrb[0].mxu0
    %2507 = vdwg.mxu0
    %v2509 = vsel %vm1558, %v1379, 0
    %2511 = vmatprep.subr.mxu0 0.0
    %2512 = vmatpush1.msra.mxu0 %v1434
    %2513 = vmatprep.subr.mxu0 0.0
    %2514 = vmatpush1.msra.mxu0 %v1435
    %2515 = vmatprep.subr.mxu0 0.0
    %2516 = vmatpush1.msra.mxu0 %v1436
    %2517 = vmatprep.subr.mxu0 0.0
    %2518 = vmatpush1.msra.mxu0 %v1437
    %2519 = vmatprep.subr.mxu0 0.0
    %2520 = vmatpush1.msra.mxu0 0.0
    %2521 = vmatprep.subr.mxu0 0.0
    %2522 = vmatpush1.msra.mxu0 0.0
    %2523 = vmatprep.subr.mxu0 0.0
    %2524 = vmatpush1.msra.mxu0 0.0
    %2525 = vmatprep.subr.mxu0 0.0
    %2526 = vmatpush1.msra.mxu0 0.0
    %2527 = vmatprep.subr.mxu0 0.0
    %2528 = vmatpush1.msra.mxu0 0.0
    %2529 = vmatprep.subr.mxu0 0.0
    %2530 = vmatpush1.msra.mxu0 0.0
    %2531 = vmatprep.subr.mxu0 0.0
    %2532 = vmatpush1.msra.mxu0 0.0
    %2533 = vmatprep.subr.mxu0 0.0
    %2534 = vmatpush1.msra.mxu0 0.0
    %2535 = vmatprep.subr.mxu0 0.0
    %2536 = vmatpush1.msra.mxu0 0.0
    %2537 = vmatprep.subr.mxu0 0.0
    %2538 = vmatpush1.msra.mxu0 0.0
    %2539 = vmatprep.subr.mxu0 0.0
    %2540 = vmatpush1.msra.mxu0 0.0
    %2541 = vmatprep.subr.mxu0 0.0
    %2542 = vmatpush1.msra.mxu0 0.0
    %2543 = vmatprep.subr.mxu0 0.0
    %2544 = vmatpush1.msra.mxu0 0.0
    %2545 = vmatprep.subr.mxu0 0.0
    %2546 = vmatpush1.msra.mxu0 0.0
    %2547 = vmatprep.subr.mxu0 0.0
    %2548 = vmatpush1.msra.mxu0 0.0
    %2549 = vmatprep.subr.mxu0 0.0
    %2550 = vmatpush1.msra.mxu0 0.0
    %2551 = vmatprep.subr.mxu0 0.0
    %2552 = vmatpush1.msra.mxu0 0.0
    %2553 = vmatprep.subr.mxu0 0.0
    %2554 = vmatpush1.msra.mxu0 0.0
    %2555 = vmatprep.subr.mxu0 0.0
    %2556 = vmatpush1.msra.mxu0 0.0
    %2557 = vmatprep.subr.mxu0 0.0
    %2558 = vmatpush1.msra.mxu0 0.0
    %2559 = vmatprep.subr.mxu0 0.0
    %2560 = vmatpush1.msra.mxu0 0.0
    %2561 = vmatprep.subr.mxu0 0.0
    %2562 = vmatpush1.msra.mxu0 0.0
    %2563 = vmatprep.subr.mxu0 0.0
    %2564 = vmatpush1.msra.mxu0 0.0
    %2565 = vmatprep.subr.mxu0 0.0
    %2566 = vmatpush1.msra.mxu0 0.0
    %2567 = vmatprep.subr.mxu0 0.0
    %2568 = vmatpush1.msra.mxu0 0.0
    %2569 = vmatprep.subr.mxu0 0.0
    %2570 = vmatpush1.msra.mxu0 0.0
    %2571 = vmatprep.subr.mxu0 0.0
    %2572 = vmatpush1.msra.mxu0 0.0
    %2573 = vmatprep.subr.mxu0 0.0
    %2574 = vmatpush1.msra.mxu0 0.0
    %2575 = vmatprep.mubr.f32.mxu0 0.0
    %2576 = vmatmul.mubr.f32.gmra.mrb[0].mxu0 %v2509
    %v2577 = vpop.f32.mrb[0].mxu0
    %v2578 = vadd.f32 %v1533, %v2577
    %v2579 = vpop.f32.mrb[0].mxu0
    %2580 = vdwg.mxu0
    %v2582 = vsel %vm1558, %v1380, 0
    %2584 = vmatprep.subr.mxu0 0.0
    %2585 = vmatpush1.msra.mxu0 %v1438
    %2586 = vmatprep.subr.mxu0 0.0
    %2587 = vmatpush1.msra.mxu0 %v1439
    %2588 = vmatprep.subr.mxu0 0.0
    %2589 = vmatpush1.msra.mxu0 %v1440
    %2590 = vmatprep.subr.mxu0 0.0
    %2591 = vmatpush1.msra.mxu0 %v1441
    %2592 = vmatprep.subr.mxu0 0.0
    %2593 = vmatpush1.msra.mxu0 0.0
    %2594 = vmatprep.subr.mxu0 0.0
    %2595 = vmatpush1.msra.mxu0 0.0
    %2596 = vmatprep.subr.mxu0 0.0
    %2597 = vmatpush1.msra.mxu0 0.0
    %2598 = vmatprep.subr.mxu0 0.0
    %2599 = vmatpush1.msra.mxu0 0.0
    %2600 = vmatprep.subr.mxu0 0.0
    %2601 = vmatpush1.msra.mxu0 0.0
    %2602 = vmatprep.subr.mxu0 0.0
    %2603 = vmatpush1.msra.mxu0 0.0
    %2604 = vmatprep.subr.mxu0 0.0
    %2605 = vmatpush1.msra.mxu0 0.0
    %2606 = vmatprep.subr.mxu0 0.0
    %2607 = vmatpush1.msra.mxu0 0.0
    %2608 = vmatprep.subr.mxu0 0.0
    %2609 = vmatpush1.msra.mxu0 0.0
    %2610 = vmatprep.subr.mxu0 0.0
    %2611 = vmatpush1.msra.mxu0 0.0
    %2612 = vmatprep.subr.mxu0 0.0
    %2613 = vmatpush1.msra.mxu0 0.0
    %2614 = vmatprep.subr.mxu0 0.0
    %2615 = vmatpush1.msra.mxu0 0.0
    %2616 = vmatprep.subr.mxu0 0.0
    %2617 = vmatpush1.msra.mxu0 0.0
    %2618 = vmatprep.subr.mxu0 0.0
    %2619 = vmatpush1.msra.mxu0 0.0
    %2620 = vmatprep.subr.mxu0 0.0
    %2621 = vmatpush1.msra.mxu0 0.0
    %2622 = vmatprep.subr.mxu0 0.0
    %2623 = vmatpush1.msra.mxu0 0.0
    %2624 = vmatprep.subr.mxu0 0.0
    %2625 = vmatpush1.msra.mxu0 0.0
    %2626 = vmatprep.subr.mxu0 0.0
    %2627 = vmatpush1.msra.mxu0 0.0
    %2628 = vmatprep.subr.mxu0 0.0
    %2629 = vmatpush1.msra.mxu0 0.0
    %2630 = vmatprep.subr.mxu0 0.0
    %2631 = vmatpush1.msra.mxu0 0.0
    %2632 = vmatprep.subr.mxu0 0.0
    %2633 = vmatpush1.msra.mxu0 0.0
    %2634 = vmatprep.subr.mxu0 0.0
    %2635 = vmatpush1.msra.mxu0 0.0
    %2636 = vmatprep.subr.mxu0 0.0
    %2637 = vmatpush1.msra.mxu0 0.0
    %2638 = vmatprep.subr.mxu0 0.0
    %2639 = vmatpush1.msra.mxu0 0.0
    %2640 = vmatprep.subr.mxu0 0.0
    %2641 = vmatpush1.msra.mxu0 0.0
    %2642 = vmatprep.subr.mxu0 0.0
    %2643 = vmatpush1.msra.mxu0 0.0
    %2644 = vmatprep.subr.mxu0 0.0
    %2645 = vmatpush1.msra.mxu0 0.0
    %2646 = vmatprep.subr.mxu0 0.0
    %2647 = vmatpush1.msra.mxu0 0.0
    %2648 = vmatprep.mubr.f32.mxu0 0.0
    %2649 = vmatmul.mubr.f32.gmra.mrb[0].mxu0 %v2582
    %v2650 = vpop.f32.mrb[0].mxu0
    %v2651 = vadd.f32 %v1537, %v2650
    %v2652 = vpop.f32.mrb[0].mxu0
    %2653 = vdwg.mxu0
    %v2655 = vsel %vm1558, %v1381, 0
    %2657 = vmatprep.subr.mxu0 0.0
    %2658 = vmatpush1.msra.mxu0 %v1442
    %2659 = vmatprep.subr.mxu0 0.0
    %2660 = vmatpush1.msra.mxu0 %v1443
    %2661 = vmatprep.subr.mxu0 0.0
    %2662 = vmatpush1.msra.mxu0 %v1444
    %2663 = vmatprep.subr.mxu0 0.0
    %2664 = vmatpush1.msra.mxu0 %v1445
    %2665 = vmatprep.subr.mxu0 0.0
    %2666 = vmatpush1.msra.mxu0 0.0
    %2667 = vmatprep.subr.mxu0 0.0
    %2668 = vmatpush1.msra.mxu0 0.0
    %2669 = vmatprep.subr.mxu0 0.0
    %2670 = vmatpush1.msra.mxu0 0.0
    %2671 = vmatprep.subr.mxu0 0.0
    %2672 = vmatpush1.msra.mxu0 0.0
    %2673 = vmatprep.subr.mxu0 0.0
    %2674 = vmatpush1.msra.mxu0 0.0
    %2675 = vmatprep.subr.mxu0 0.0
    %2676 = vmatpush1.msra.mxu0 0.0
    %2677 = vmatprep.subr.mxu0 0.0
    %2678 = vmatpush1.msra.mxu0 0.0
    %2679 = vmatprep.subr.mxu0 0.0
    %2680 = vmatpush1.msra.mxu0 0.0
    %2681 = vmatprep.subr.mxu0 0.0
    %2682 = vmatpush1.msra.mxu0 0.0
    %2683 = vmatprep.subr.mxu0 0.0
    %2684 = vmatpush1.msra.mxu0 0.0
    %2685 = vmatprep.subr.mxu0 0.0
    %2686 = vmatpush1.msra.mxu0 0.0
    %2687 = vmatprep.subr.mxu0 0.0
    %2688 = vmatpush1.msra.mxu0 0.0
    %2689 = vmatprep.subr.mxu0 0.0
    %2690 = vmatpush1.msra.mxu0 0.0
    %2691 = vmatprep.subr.mxu0 0.0
    %2692 = vmatpush1.msra.mxu0 0.0
    %2693 = vmatprep.subr.mxu0 0.0
    %2694 = vmatpush1.msra.mxu0 0.0
    %2695 = vmatprep.subr.mxu0 0.0
    %2696 = vmatpush1.msra.mxu0 0.0
    %2697 = vmatprep.subr.mxu0 0.0
    %2698 = vmatpush1.msra.mxu0 0.0
    %2699 = vmatprep.subr.mxu0 0.0
    %2700 = vmatpush1.msra.mxu0 0.0
    %2701 = vmatprep.subr.mxu0 0.0
    %2702 = vmatpush1.msra.mxu0 0.0
    %2703 = vmatprep.subr.mxu0 0.0
    %2704 = vmatpush1.msra.mxu0 0.0
    %2705 = vmatprep.subr.mxu0 0.0
    %2706 = vmatpush1.msra.mxu0 0.0
    %2707 = vmatprep.subr.mxu0 0.0
    %2708 = vmatpush1.msra.mxu0 0.0
    %2709 = vmatprep.subr.mxu0 0.0
    %2710 = vmatpush1.msra.mxu0 0.0
    %2711 = vmatprep.subr.mxu0 0.0
    %2712 = vmatpush1.msra.mxu0 0.0
    %2713 = vmatprep.subr.mxu0 0.0
    %2714 = vmatpush1.msra.mxu0 0.0
    %2715 = vmatprep.subr.mxu0 0.0
    %2716 = vmatpush1.msra.mxu0 0.0
    %2717 = vmatprep.subr.mxu0 0.0
    %2718 = vmatpush1.msra.mxu0 0.0
    %2719 = vmatprep.subr.mxu0 0.0
    %2720 = vmatpush1.msra.mxu0 0.0
    %2721 = vmatprep.mubr.f32.mxu0 0.0
    %2722 = vmatmul.mubr.f32.gmra.mrb[0].mxu0 %v2655
    %v2723 = vpop.f32.mrb[0].mxu0
    %v2724 = vadd.f32 %v1541, %v2723
    %v2725 = vpop.f32.mrb[0].mxu0
    %2726 = vdwg.mxu0
    %vm2727 = vcmask 123904
    %2728 = vst.msk [vmem:[#allocation2] sm:$0x3] %vm2727, %v1629
    %2729 = vst.msk [vmem:[#allocation2 + $0x2] sm:$0x3] %vm2727, %v1702
    %2730 = vst.msk [vmem:[#allocation2 + $0x4] sm:$0x3] %vm2727, %v1775
    %2731 = vst.msk [vmem:[#allocation2 + $0x6] sm:$0x3] %vm2727, %v1848
    %2732 = vst.msk [vmem:[#allocation2 + $0x8] sm:$0x3] %vm2727, %v1921
    %2733 = vst.msk [vmem:[#allocation2 + $0xa] sm:$0x3] %vm2727, %v1994
    %2734 = vst.msk [vmem:[#allocation2 + $0xc] sm:$0x3] %vm2727, %v2067
    %2735 = vst.msk [vmem:[#allocation2 + $0xe] sm:$0x3] %vm2727, %v2140
    %2736 = vst.msk [vmem:[#allocation2 + $0x10] sm:$0x3] %vm2727, %v2213
    %2737 = vst.msk [vmem:[#allocation2 + $0x12] sm:$0x3] %vm2727, %v2286
    %2738 = vst.msk [vmem:[#allocation2 + $0x14] sm:$0x3] %vm2727, %v2359
    %2739 = vst.msk [vmem:[#allocation2 + $0x16] sm:$0x3] %vm2727, %v2432
    %2740 = vst.msk [vmem:[#allocation2 + $0x18] sm:$0x3] %vm2727, %v2505
    %2741 = vst.msk [vmem:[#allocation2 + $0x1a] sm:$0x3] %vm2727, %v2578
    %2742 = vst.msk [vmem:[#allocation2 + $0x1c] sm:$0x3] %vm2727, %v2651
    %2743 = vst.msk [vmem:[#allocation2 + $0x1e] sm:$0x3] %vm2727, %v2724
    // Predicated region
    $region22: #{tpu_custom_call.1} parent=1 // pred_check
      _
    $region23: #{tpu_custom_call.1} parent=1 // pred_check_branch
      %2745 = sbr.rel (0) target = $region25
    $region24: #{tpu_custom_call.1} parent=1 // pred_region
      %s2747 = ssub.s32 512, 512
      %2748 = vsyncadd [#allocation3], %s2747
      %s2749 = sshll.u32 [#allocation2], 4
      %s2750 = int_to_ptr.vmem [resolvable:$true] %s2749
      %2755 = dma.vmem_to_hbm [thread:$0]  %s2750, 512, %s5, [#allocation3], 32, 32, 2
    $region25: #{tpu_custom_call.1} parent=1 // pred_fallthru
      _
    // Predicated region
    $region26: #{tpu_custom_call.1} parent=1 // pred_check
      _
    $region27: #{tpu_custom_call.1} parent=1 // pred_check_branch
      %2757 = sbr.rel (0) target = $region29
    $region28: #{tpu_custom_call.1} parent=1 // pred_region
      %2758 = dma.done [#allocation3], 512
    $region29: #{tpu_custom_call.1} parent=1 // pred_fallthru
      _
    %2759 = vsyncpa [#allocation3], 1

</llo_original>
